<compile_context>
chip_gen: v5e
topology: v5e:2x2
jax: 0.10.0
libtpu: 0.0.40
codegen_flags: <defaults>
</compile_context>

<pallas_src>
import numpy as np
import jax
import jax.numpy as jnp
from jax import lax
from jax.experimental import pallas as pl
from jax.experimental.pallas import tpu as pltpu

EPS = 1e-5  # PyTorch BatchNorm1d default eps


# ----------------------------------------------------------------------------
# Pallas kernel: both GNN layers, fully resident in VMEM (shapes are tiny).
# ----------------------------------------------------------------------------
def gnn_kernel(x_ref, edge_ref, wn_ref, we_ref, xout_ref, eout_ref):
    x = x_ref[...]        # (B, N, C)       float32
    edge = edge_ref[...]  # (B, N, N, C)    float32
    B, N, C = x.shape

    inv_bc = 1.0 / float(B * C)   # BN count (stats over batch+channel)
    inv_n = 1.0 / float(N)

    def bn(z, axes):
        # BatchNorm1d (training mode), gamma=1 / beta=0, biased variance.
        # Features are the non-reduced axes; stats over `axes` (batch, channel).
        s = jnp.sum(z, axis=axes, keepdims=True)
        mean = s * inv_bc                      # constant multiply, no divide
        d = z - mean                           # computed once, reused below
        var = jnp.sum(d * d, axis=axes, keepdims=True) * inv_bc
        inv_std = lax.rsqrt(var + EPS)         # EUP
        return d * inv_std

    def relu(z):
        return jnp.maximum(z, 0.0)

    def layer(x, edge, w_node, w_edge):
        # w_node: (C, 4C) = [A^T | B^T | U^T | V^T]  (pre-transposed on host)
        # w_edge: (C, C)  = E^T
        res = x

        # --- fused node linears: one matmul with a 128-wide output ----------
        h = jnp.dot(x.reshape(B * N, C), w_node,
                    preferred_element_type=jnp.float32)      # (B*N, 4C)
        h = h.reshape(B, N, 4 * C)
        Vix = h[..., 0 * C:1 * C]   # A(x), indexed by edge end   i
        Vjx = h[..., 1 * C:2 * C]   # B(x), indexed by edge start j
        Uix = h[..., 2 * C:3 * C]   # U(x)
        Ujx = h[..., 3 * C:4 * C]   # V(x), indexed by edge start j

        # --- edge linear -----------------------------------------------------
        e_lin = jnp.dot(edge.reshape(B * N * N, C), w_edge,
                        preferred_element_type=jnp.float32)
        e_lin = e_lin.reshape(B, N, N, C)

        # einsum('ev,bvc->bec', end, Vix)   == broadcast over j (axis 2)
        # einsum('ev,bvc->bec', start, Vjx) == broadcast over i (axis 1)
        msg = Vix[:, :, None, :] + Vjx[:, None, :, :] + e_lin   # (B, N, N, C)
        edge = edge + relu(bn(msg, (0, 3)))                     # rank-4 BN

        # --- sigmoid + softmax over j (axis 2) -------------------------------
        # sigmoid via EUP exp + approx reciprocal (EUP slot, VALU-free divide)
        en = jnp.exp(-edge)                                     # one EUP pass
        s = pl.reciprocal(1.0 + en, approx=True)
        # s is bounded in (0,1) => exp cannot overflow: skip max-subtraction.
        p = jnp.exp(s)
        denom = jnp.sum(p, axis=2, keepdims=True)
        attn = p * pl.reciprocal(denom, approx=True)            # (B, N, N, C)

        # einsum('ve,bec->bvc', end.T, attn * Ujx) == sum over j for node i
        agg = jnp.sum(attn * Ujx[:, None, :, :], axis=2)        # (B, N, C)
        x = Uix + agg * inv_n
        x = relu(res + bn(x, (0, 2)))
        return x, edge

    x, edge = layer(x, edge, wn_ref[0], we_ref[0])
    x, edge = layer(x, edge, wn_ref[1], we_ref[1])

    xout_ref[...] = x.astype(xout_ref.dtype)
    eout_ref[...] = edge.astype(eout_ref.dtype)


def _gnn_forward_impl(x, edge, weights):
    """x: (B, N, C); edge: (B, N*N, C); weights: (10, C, C) stacked
    in order [A1, B1, E1, U1, V1, A2, B2, E2, U2, V2] (PyTorch layout: out,in)."""
    B, N, C = x.shape

    # ---- host-side weight prep (free under jit): stack + transpose once ----
    A1, B1, E1, U1, V1, A2, B2, E2, U2, V2 = (weights[i] for i in range(10))
    w_node = jnp.stack([
        jnp.concatenate([A1, B1, U1, V1], axis=0).T,   # (C, 4C)
        jnp.concatenate([A2, B2, U2, V2], axis=0).T,
    ])                                                 # (2, C, 4C)
    w_edge = jnp.stack([E1.T, E2.T])                   # (2, C, C)

    edge4 = edge.reshape(B, N, N, C)                   # free XLA reshape

    vmem = pl.BlockSpec(memory_space=pltpu.MemorySpace.VMEM)
    x_out, e_out = pl.pallas_call(
        gnn_kernel,
        out_shape=(jax.ShapeDtypeStruct((B, N, C), jnp.float32),
                   jax.ShapeDtypeStruct((B, N, N, C), jnp.float32)),
        in_specs=[vmem, vmem, vmem, vmem],
        out_specs=(vmem, vmem),
    )(x, edge4, w_node, w_edge)
    return x_out, e_out.reshape(B, N * N, C)


gnn_forward = jax.jit(_gnn_forward_impl)


# ----------------------------------------------------------------------------
# Pure-JAX reference (mirrors the PyTorch forward, einsum with start/end)
# ----------------------------------------------------------------------------
def create_e_matrix(n):
    end = np.zeros((n * n, n), dtype=np.float32)
    for i in range(n):
        end[i * n:(i + 1) * n, i] = 1.0
    start = np.tile(np.eye(n, dtype=np.float32), (n, 1))
    return jnp.asarray(start), jnp.asarray(end)


def gnn_reference(x, edge, W, n):
    start, end = create_e_matrix(n)

    def bn(z):
        mean = jnp.mean(z, axis=(0, 2), keepdims=True)
        var = jnp.mean((z - mean) ** 2, axis=(0, 2), keepdims=True)
        return (z - mean) / jnp.sqrt(var + EPS)

    def layer(x, edge, A, Bw, E, U, V):
        res = x
        Vix = jnp.einsum('bvc,dc->bvd', x, A)
        Vjx = jnp.einsum('bvc,dc->bvd', x, Bw)
        e = jnp.einsum('bec,dc->bed', edge, E)
        edge = edge + jax.nn.relu(
            bn(jnp.einsum('ev,bvc->bec', end, Vix)
               + jnp.einsum('ev,bvc->bec', start, Vjx) + e))
        e = jax.nn.sigmoid(edge)
        b, _, c = e.shape
        e = jax.nn.softmax(e.reshape(b, n, n, c), axis=2).reshape(b, n * n, c)
        Ujx = jnp.einsum('ev,bvc->bec', start, jnp.einsum('bvc,dc->bvd', x, V))
        Uix = jnp.einsum('bvc,dc->bvd', x, U)
        x = Uix + jnp.einsum('ve,bec->bvc', end.T, e * Ujx) / n
        x = jax.nn.relu(res + bn(x))
        return x, edge

    x, edge = layer(x, edge, W[0], W[1], W[2], W[3], W[4])
    x, edge = layer(x, edge, W[5], W[6], W[7], W[8], W[9])
    return x, edge


# ----------------------------------------------------------------------------
if __name__ == "__main__":
    B = 2            # batch
    N = 8            # num_classes (graph nodes)
    C = 32           # in_channels (hidden)

    key = jax.random.PRNGKey(0)
    kx, ke, kw = jax.random.split(key, 3)

    x = jax.random.normal(kx, (B, N, C), dtype=jnp.float32)
    edge = jax.random.normal(ke, (B, N * N, C), dtype=jnp.float32)

    # 10 bias-free Linear weights, init N(0, sqrt(2/dim_in)) like the module.
    scale = np.sqrt(2.0 / C).astype(np.float32)
    weights = jax.random.normal(kw, (10, C, C), dtype=jnp.float32) * scale

    x_out, edge_out = gnn_forward(x, edge, weights)
    jax.block_until_ready((x_out, edge_out))

    x_ref, edge_ref = gnn_reference(x, edge, weights, N)

    # Tolerance accommodates the EUP approx-reciprocal used for the sigmoid
    # and softmax denominator (still catches any structural / layout error,
    # which would produce O(1) discrepancies).
    assert jnp.allclose(x_out, x_ref, rtol=2e-2, atol=2e-2), "x mismatch"
    assert jnp.allclose(edge_out, edge_ref, rtol=2e-2, atol=2e-2), "edge mismatch"

    print("KERNEL_OK")
</pallas_src>

<mosaic_0001>
module attributes {stable_mosaic.version = 11 : i64} {
  func.func @gnn_kernel(%arg0: memref<2x8x32xf32, #tpu.memory_space<vmem>>, %arg1: memref<2x8x8x32xf32, #tpu.memory_space<vmem>>, %arg2: memref<2x32x128xf32, #tpu.memory_space<vmem>>, %arg3: memref<2x32x32xf32, #tpu.memory_space<vmem>>, %arg4: memref<2x8x32xf32, #tpu.memory_space<vmem>>, %arg5: memref<2x8x8x32xf32, #tpu.memory_space<vmem>>) attributes {dimension_semantics = [], scalar_prefetch = 0 : i64, scratch_operands = 0 : i64, tpu.core_type = #tpu.core_type<tc>} {
    %c0 = arith.constant 0 : index
    %c0_0 = arith.constant 0 : index
    %c0_1 = arith.constant 0 : index
    %0 = vector.load %arg0[%c0, %c0_0, %c0_1] : memref<2x8x32xf32, #tpu.memory_space<vmem>>, vector<2x8x32xf32>
    %c0_2 = arith.constant 0 : index
    %c0_3 = arith.constant 0 : index
    %c0_4 = arith.constant 0 : index
    %c0_5 = arith.constant 0 : index
    %1 = vector.load %arg1[%c0_2, %c0_3, %c0_4, %c0_5] : memref<2x8x8x32xf32, #tpu.memory_space<vmem>>, vector<2x8x8x32xf32>
    %c0_6 = arith.constant 0 : index
    %c0_7 = arith.constant 0 : index
    %c0_8 = arith.constant 0 : index
    %2 = vector.load %arg2[%c0_6, %c0_7, %c0_8] : memref<2x32x128xf32, #tpu.memory_space<vmem>>, vector<1x32x128xf32>
    %3 = vector.shape_cast %2 : vector<1x32x128xf32> to vector<32x128xf32>
    %c0_9 = arith.constant 0 : index
    %c0_10 = arith.constant 0 : index
    %c0_11 = arith.constant 0 : index
    %4 = vector.load %arg3[%c0_9, %c0_10, %c0_11] : memref<2x32x32xf32, #tpu.memory_space<vmem>>, vector<1x32x32xf32>
    %5 = vector.shape_cast %4 : vector<1x32x32xf32> to vector<32x32xf32>
    %6 = vector.shape_cast %0 : vector<2x8x32xf32> to vector<16x32xf32>
    %cst = arith.constant dense<0.000000e+00> : vector<16x128xf32>
    %7 = tpu.matmul %6, %3, %cst {dimension_numbers = #tpu.dot_dimension_numbers<[1], [0], [0], [1], [0, 0, 1, 1], [], []>} : vector<16x32xf32>, vector<32x128xf32>, vector<16x128xf32> -> vector<16x128xf32>
    %8 = vector.shape_cast %7 : vector<16x128xf32> to vector<2x8x128xf32>
    %9 = vector.extract_strided_slice %8 {offsets = [0, 0, 0], sizes = [2, 8, 32], strides = [1, 1, 1]} : vector<2x8x128xf32> to vector<2x8x32xf32>
    %10 = vector.extract_strided_slice %8 {offsets = [0, 0, 32], sizes = [2, 8, 32], strides = [1, 1, 1]} : vector<2x8x128xf32> to vector<2x8x32xf32>
    %11 = vector.extract_strided_slice %8 {offsets = [0, 0, 64], sizes = [2, 8, 32], strides = [1, 1, 1]} : vector<2x8x128xf32> to vector<2x8x32xf32>
    %12 = vector.extract_strided_slice %8 {offsets = [0, 0, 96], sizes = [2, 8, 32], strides = [1, 1, 1]} : vector<2x8x128xf32> to vector<2x8x32xf32>
    %13 = vector.shape_cast %1 : vector<2x8x8x32xf32> to vector<128x32xf32>
    %cst_12 = arith.constant dense<0.000000e+00> : vector<128x32xf32>
    %14 = tpu.matmul %13, %5, %cst_12 {dimension_numbers = #tpu.dot_dimension_numbers<[1], [0], [0], [1], [0, 0, 1, 1], [], []>} : vector<128x32xf32>, vector<32x32xf32>, vector<128x32xf32> -> vector<128x32xf32>
    %15 = vector.shape_cast %14 : vector<128x32xf32> to vector<2x8x8x32xf32>
    %16 = vector.shape_cast %9 : vector<2x8x32xf32> to vector<2x8x1x32xf32>
    %17 = vector.shape_cast %10 : vector<2x8x32xf32> to vector<2x1x8x32xf32>
    %18 = vector.broadcast %16 : vector<2x8x1x32xf32> to vector<2x8x8x32xf32>
    %19 = vector.broadcast %17 : vector<2x1x8x32xf32> to vector<2x8x8x32xf32>
    %20 = arith.addf %18, %19 : vector<2x8x8x32xf32>
    %21 = arith.addf %20, %15 : vector<2x8x8x32xf32>
    %cst_13 = arith.constant dense<0.000000e+00> : vector<8x8xf32>
    %22 = vector.multi_reduction <add>, %21, %cst_13 [0, 3] : vector<2x8x8x32xf32> to vector<8x8xf32>
    %23 = vector.shape_cast %22 : vector<8x8xf32> to vector<1x8x8x1xf32>
    %cst_14 = arith.constant 1.562500e-02 : f32
    %24 = vector.broadcast %cst_14 : f32 to vector<1x8x8x1xf32>
    %25 = arith.mulf %23, %24 : vector<1x8x8x1xf32>
    %26 = vector.broadcast %25 : vector<1x8x8x1xf32> to vector<2x8x8x32xf32>
    %27 = arith.subf %21, %26 : vector<2x8x8x32xf32>
    %28 = arith.mulf %27, %27 : vector<2x8x8x32xf32>
    %cst_15 = arith.constant dense<0.000000e+00> : vector<8x8xf32>
    %29 = vector.multi_reduction <add>, %28, %cst_15 [0, 3] : vector<2x8x8x32xf32> to vector<8x8xf32>
    %30 = vector.shape_cast %29 : vector<8x8xf32> to vector<1x8x8x1xf32>
    %cst_16 = arith.constant 1.562500e-02 : f32
    %31 = vector.broadcast %cst_16 : f32 to vector<1x8x8x1xf32>
    %32 = arith.mulf %30, %31 : vector<1x8x8x1xf32>
    %cst_17 = arith.constant 9.99999974E-6 : f32
    %33 = vector.broadcast %cst_17 : f32 to vector<1x8x8x1xf32>
    %34 = arith.addf %32, %33 : vector<1x8x8x1xf32>
    %35 = math.rsqrt %34 : vector<1x8x8x1xf32>
    %36 = vector.broadcast %35 : vector<1x8x8x1xf32> to vector<2x8x8x32xf32>
    %37 = arith.mulf %27, %36 : vector<2x8x8x32xf32>
    %cst_18 = arith.constant 0.000000e+00 : f32
    %38 = vector.broadcast %cst_18 : f32 to vector<2x8x8x32xf32>
    %39 = arith.maximumf %37, %38 : vector<2x8x8x32xf32>
    %40 = arith.addf %1, %39 : vector<2x8x8x32xf32>
    %cst_19 = arith.constant 0.000000e+00 : f32
    %41 = vector.broadcast %cst_19 : f32 to vector<2x8x8x32xf32>
    %42 = arith.subf %41, %40 : vector<2x8x8x32xf32>
    %43 = math.exp %42 : vector<2x8x8x32xf32>
    %cst_20 = arith.constant 1.000000e+00 : f32
    %44 = vector.broadcast %cst_20 : f32 to vector<2x8x8x32xf32>
    %45 = arith.addf %44, %43 : vector<2x8x8x32xf32>
    %46 = tpu.reciprocal %45 {approx = true} : vector<2x8x8x32xf32> -> vector<2x8x8x32xf32>
    %47 = math.exp %46 : vector<2x8x8x32xf32>
    %cst_21 = arith.constant dense<0.000000e+00> : vector<2x8x32xf32>
    %48 = vector.multi_reduction <add>, %47, %cst_21 [2] : vector<2x8x8x32xf32> to vector<2x8x32xf32>
    %49 = vector.shape_cast %48 : vector<2x8x32xf32> to vector<2x8x1x32xf32>
    %50 = tpu.reciprocal %49 {approx = true} : vector<2x8x1x32xf32> -> vector<2x8x1x32xf32>
    %51 = vector.broadcast %50 : vector<2x8x1x32xf32> to vector<2x8x8x32xf32>
    %52 = arith.mulf %47, %51 : vector<2x8x8x32xf32>
    %53 = vector.shape_cast %12 : vector<2x8x32xf32> to vector<2x1x8x32xf32>
    %54 = vector.broadcast %53 : vector<2x1x8x32xf32> to vector<2x8x8x32xf32>
    %55 = arith.mulf %52, %54 : vector<2x8x8x32xf32>
    %cst_22 = arith.constant dense<0.000000e+00> : vector<2x8x32xf32>
    %56 = vector.multi_reduction <add>, %55, %cst_22 [2] : vector<2x8x8x32xf32> to vector<2x8x32xf32>
    %cst_23 = arith.constant 1.250000e-01 : f32
    %57 = vector.broadcast %cst_23 : f32 to vector<2x8x32xf32>
    %58 = arith.mulf %56, %57 : vector<2x8x32xf32>
    %59 = arith.addf %11, %58 : vector<2x8x32xf32>
    %cst_24 = arith.constant dense<0.000000e+00> : vector<8xf32>
    %60 = vector.multi_reduction <add>, %59, %cst_24 [0, 2] : vector<2x8x32xf32> to vector<8xf32>
    %61 = vector.shape_cast %60 : vector<8xf32> to vector<1x8x1xf32>
    %cst_25 = arith.constant 1.562500e-02 : f32
    %62 = vector.broadcast %cst_25 : f32 to vector<1x8x1xf32>
    %63 = arith.mulf %61, %62 : vector<1x8x1xf32>
    %64 = vector.broadcast %63 : vector<1x8x1xf32> to vector<2x8x32xf32>
    %65 = arith.subf %59, %64 : vector<2x8x32xf32>
    %66 = arith.mulf %65, %65 : vector<2x8x32xf32>
    %cst_26 = arith.constant dense<0.000000e+00> : vector<8xf32>
    %67 = vector.multi_reduction <add>, %66, %cst_26 [0, 2] : vector<2x8x32xf32> to vector<8xf32>
    %68 = vector.shape_cast %67 : vector<8xf32> to vector<1x8x1xf32>
    %cst_27 = arith.constant 1.562500e-02 : f32
    %69 = vector.broadcast %cst_27 : f32 to vector<1x8x1xf32>
    %70 = arith.mulf %68, %69 : vector<1x8x1xf32>
    %cst_28 = arith.constant 9.99999974E-6 : f32
    %71 = vector.broadcast %cst_28 : f32 to vector<1x8x1xf32>
    %72 = arith.addf %70, %71 : vector<1x8x1xf32>
    %73 = math.rsqrt %72 : vector<1x8x1xf32>
    %74 = vector.broadcast %73 : vector<1x8x1xf32> to vector<2x8x32xf32>
    %75 = arith.mulf %65, %74 : vector<2x8x32xf32>
    %76 = arith.addf %0, %75 : vector<2x8x32xf32>
    %cst_29 = arith.constant 0.000000e+00 : f32
    %77 = vector.broadcast %cst_29 : f32 to vector<2x8x32xf32>
    %78 = arith.maximumf %76, %77 : vector<2x8x32xf32>
    %c1 = arith.constant 1 : index
    %c0_30 = arith.constant 0 : index
    %c0_31 = arith.constant 0 : index
    %79 = vector.load %arg2[%c1, %c0_30, %c0_31] : memref<2x32x128xf32, #tpu.memory_space<vmem>>, vector<1x32x128xf32>
    %80 = vector.shape_cast %79 : vector<1x32x128xf32> to vector<32x128xf32>
    %c1_32 = arith.constant 1 : index
    %c0_33 = arith.constant 0 : index
    %c0_34 = arith.constant 0 : index
    %81 = vector.load %arg3[%c1_32, %c0_33, %c0_34] : memref<2x32x32xf32, #tpu.memory_space<vmem>>, vector<1x32x32xf32>
    %82 = vector.shape_cast %81 : vector<1x32x32xf32> to vector<32x32xf32>
    %83 = vector.shape_cast %78 : vector<2x8x32xf32> to vector<16x32xf32>
    %cst_35 = arith.constant dense<0.000000e+00> : vector<16x128xf32>
    %84 = tpu.matmul %83, %80, %cst_35 {dimension_numbers = #tpu.dot_dimension_numbers<[1], [0], [0], [1], [0, 0, 1, 1], [], []>} : vector<16x32xf32>, vector<32x128xf32>, vector<16x128xf32> -> vector<16x128xf32>
    %85 = vector.shape_cast %84 : vector<16x128xf32> to vector<2x8x128xf32>
    %86 = vector.extract_strided_slice %85 {offsets = [0, 0, 0], sizes = [2, 8, 32], strides = [1, 1, 1]} : vector<2x8x128xf32> to vector<2x8x32xf32>
    %87 = vector.extract_strided_slice %85 {offsets = [0, 0, 32], sizes = [2, 8, 32], strides = [1, 1, 1]} : vector<2x8x128xf32> to vector<2x8x32xf32>
    %88 = vector.extract_strided_slice %85 {offsets = [0, 0, 64], sizes = [2, 8, 32], strides = [1, 1, 1]} : vector<2x8x128xf32> to vector<2x8x32xf32>
    %89 = vector.extract_strided_slice %85 {offsets = [0, 0, 96], sizes = [2, 8, 32], strides = [1, 1, 1]} : vector<2x8x128xf32> to vector<2x8x32xf32>
    %90 = vector.shape_cast %40 : vector<2x8x8x32xf32> to vector<128x32xf32>
    %cst_36 = arith.constant dense<0.000000e+00> : vector<128x32xf32>
    %91 = tpu.matmul %90, %82, %cst_36 {dimension_numbers = #tpu.dot_dimension_numbers<[1], [0], [0], [1], [0, 0, 1, 1], [], []>} : vector<128x32xf32>, vector<32x32xf32>, vector<128x32xf32> -> vector<128x32xf32>
    %92 = vector.shape_cast %91 : vector<128x32xf32> to vector<2x8x8x32xf32>
    %93 = vector.shape_cast %86 : vector<2x8x32xf32> to vector<2x8x1x32xf32>
    %94 = vector.shape_cast %87 : vector<2x8x32xf32> to vector<2x1x8x32xf32>
    %95 = vector.broadcast %93 : vector<2x8x1x32xf32> to vector<2x8x8x32xf32>
    %96 = vector.broadcast %94 : vector<2x1x8x32xf32> to vector<2x8x8x32xf32>
    %97 = arith.addf %95, %96 : vector<2x8x8x32xf32>
    %98 = arith.addf %97, %92 : vector<2x8x8x32xf32>
    %cst_37 = arith.constant dense<0.000000e+00> : vector<8x8xf32>
    %99 = vector.multi_reduction <add>, %98, %cst_37 [0, 3] : vector<2x8x8x32xf32> to vector<8x8xf32>
    %100 = vector.shape_cast %99 : vector<8x8xf32> to vector<1x8x8x1xf32>
    %cst_38 = arith.constant 1.562500e-02 : f32
    %101 = vector.broadcast %cst_38 : f32 to vector<1x8x8x1xf32>
    %102 = arith.mulf %100, %101 : vector<1x8x8x1xf32>
    %103 = vector.broadcast %102 : vector<1x8x8x1xf32> to vector<2x8x8x32xf32>
    %104 = arith.subf %98, %103 : vector<2x8x8x32xf32>
    %105 = arith.mulf %104, %104 : vector<2x8x8x32xf32>
    %cst_39 = arith.constant dense<0.000000e+00> : vector<8x8xf32>
    %106 = vector.multi_reduction <add>, %105, %cst_39 [0, 3] : vector<2x8x8x32xf32> to vector<8x8xf32>
    %107 = vector.shape_cast %106 : vector<8x8xf32> to vector<1x8x8x1xf32>
    %cst_40 = arith.constant 1.562500e-02 : f32
    %108 = vector.broadcast %cst_40 : f32 to vector<1x8x8x1xf32>
    %109 = arith.mulf %107, %108 : vector<1x8x8x1xf32>
    %cst_41 = arith.constant 9.99999974E-6 : f32
    %110 = vector.broadcast %cst_41 : f32 to vector<1x8x8x1xf32>
    %111 = arith.addf %109, %110 : vector<1x8x8x1xf32>
    %112 = math.rsqrt %111 : vector<1x8x8x1xf32>
    %113 = vector.broadcast %112 : vector<1x8x8x1xf32> to vector<2x8x8x32xf32>
    %114 = arith.mulf %104, %113 : vector<2x8x8x32xf32>
    %cst_42 = arith.constant 0.000000e+00 : f32
    %115 = vector.broadcast %cst_42 : f32 to vector<2x8x8x32xf32>
    %116 = arith.maximumf %114, %115 : vector<2x8x8x32xf32>
    %117 = arith.addf %40, %116 : vector<2x8x8x32xf32>
    %cst_43 = arith.constant 0.000000e+00 : f32
    %118 = vector.broadcast %cst_43 : f32 to vector<2x8x8x32xf32>
    %119 = arith.subf %118, %117 : vector<2x8x8x32xf32>
    %120 = math.exp %119 : vector<2x8x8x32xf32>
    %cst_44 = arith.constant 1.000000e+00 : f32
    %121 = vector.broadcast %cst_44 : f32 to vector<2x8x8x32xf32>
    %122 = arith.addf %121, %120 : vector<2x8x8x32xf32>
    %123 = tpu.reciprocal %122 {approx = true} : vector<2x8x8x32xf32> -> vector<2x8x8x32xf32>
    %124 = math.exp %123 : vector<2x8x8x32xf32>
    %cst_45 = arith.constant dense<0.000000e+00> : vector<2x8x32xf32>
    %125 = vector.multi_reduction <add>, %124, %cst_45 [2] : vector<2x8x8x32xf32> to vector<2x8x32xf32>
    %126 = vector.shape_cast %125 : vector<2x8x32xf32> to vector<2x8x1x32xf32>
    %127 = tpu.reciprocal %126 {approx = true} : vector<2x8x1x32xf32> -> vector<2x8x1x32xf32>
    %128 = vector.broadcast %127 : vector<2x8x1x32xf32> to vector<2x8x8x32xf32>
    %129 = arith.mulf %124, %128 : vector<2x8x8x32xf32>
    %130 = vector.shape_cast %89 : vector<2x8x32xf32> to vector<2x1x8x32xf32>
    %131 = vector.broadcast %130 : vector<2x1x8x32xf32> to vector<2x8x8x32xf32>
    %132 = arith.mulf %129, %131 : vector<2x8x8x32xf32>
    %cst_46 = arith.constant dense<0.000000e+00> : vector<2x8x32xf32>
    %133 = vector.multi_reduction <add>, %132, %cst_46 [2] : vector<2x8x8x32xf32> to vector<2x8x32xf32>
    %cst_47 = arith.constant 1.250000e-01 : f32
    %134 = vector.broadcast %cst_47 : f32 to vector<2x8x32xf32>
    %135 = arith.mulf %133, %134 : vector<2x8x32xf32>
    %136 = arith.addf %88, %135 : vector<2x8x32xf32>
    %cst_48 = arith.constant dense<0.000000e+00> : vector<8xf32>
    %137 = vector.multi_reduction <add>, %136, %cst_48 [0, 2] : vector<2x8x32xf32> to vector<8xf32>
    %138 = vector.shape_cast %137 : vector<8xf32> to vector<1x8x1xf32>
    %cst_49 = arith.constant 1.562500e-02 : f32
    %139 = vector.broadcast %cst_49 : f32 to vector<1x8x1xf32>
    %140 = arith.mulf %138, %139 : vector<1x8x1xf32>
    %141 = vector.broadcast %140 : vector<1x8x1xf32> to vector<2x8x32xf32>
    %142 = arith.subf %136, %141 : vector<2x8x32xf32>
    %143 = arith.mulf %142, %142 : vector<2x8x32xf32>
    %cst_50 = arith.constant dense<0.000000e+00> : vector<8xf32>
    %144 = vector.multi_reduction <add>, %143, %cst_50 [0, 2] : vector<2x8x32xf32> to vector<8xf32>
    %145 = vector.shape_cast %144 : vector<8xf32> to vector<1x8x1xf32>
    %cst_51 = arith.constant 1.562500e-02 : f32
    %146 = vector.broadcast %cst_51 : f32 to vector<1x8x1xf32>
    %147 = arith.mulf %145, %146 : vector<1x8x1xf32>
    %cst_52 = arith.constant 9.99999974E-6 : f32
    %148 = vector.broadcast %cst_52 : f32 to vector<1x8x1xf32>
    %149 = arith.addf %147, %148 : vector<1x8x1xf32>
    %150 = math.rsqrt %149 : vector<1x8x1xf32>
    %151 = vector.broadcast %150 : vector<1x8x1xf32> to vector<2x8x32xf32>
    %152 = arith.mulf %142, %151 : vector<2x8x32xf32>
    %153 = arith.addf %78, %152 : vector<2x8x32xf32>
    %cst_53 = arith.constant 0.000000e+00 : f32
    %154 = vector.broadcast %cst_53 : f32 to vector<2x8x32xf32>
    %155 = arith.maximumf %153, %154 : vector<2x8x32xf32>
    %c0_54 = arith.constant 0 : index
    %c0_55 = arith.constant 0 : index
    %c0_56 = arith.constant 0 : index
    %156 = vector.load %arg4[%c0_54, %c0_55, %c0_56] : memref<2x8x32xf32, #tpu.memory_space<vmem>>, vector<2x8x32xf32>
    tpu.vector_store %arg4[%c0_54, %c0_55, %c0_56], %155 {strides = array<i32>} : memref<2x8x32xf32, #tpu.memory_space<vmem>>, vector<2x8x32xf32>,
    %c0_57 = arith.constant 0 : index
    %c0_58 = arith.constant 0 : index
    %c0_59 = arith.constant 0 : index
    %c0_60 = arith.constant 0 : index
    %157 = vector.load %arg5[%c0_57, %c0_58, %c0_59, %c0_60] : memref<2x8x8x32xf32, #tpu.memory_space<vmem>>, vector<2x8x8x32xf32>
    tpu.vector_store %arg5[%c0_57, %c0_58, %c0_59, %c0_60], %117 {strides = array<i32>} : memref<2x8x8x32xf32, #tpu.memory_space<vmem>>, vector<2x8x8x32xf32>,
    return
  }
}

</mosaic_0001>

<llo_original>
// kernel: _gnn_forward_impl.1
$region0: #{_gnn_forward_impl.1}
  #allocation0 [shape = 'u32[]', space=smem, size = 0x4, offset = 0x4, fixed_abs, tag = 'smem constant byte address 0x4 - core index']
  #allocation1 [shape = 'u32[72,128]{1,0:T(1,128)}', space=vmem, size = 0x9000, scoped, tag = 'internal scratch']
  %s0 = inlined_call_operand.vmem [shape: f32[2,8,32], index: 0, kind: input, shape index: {}]
  %s1 = inlined_call_operand.vmem [shape: f32[2,8,8,32], index: 1, kind: input, shape index: {}]
  %s2 = inlined_call_operand.vmem [shape: f32[2,32,128], index: 2, kind: input, shape index: {}]
  %s3 = inlined_call_operand.vmem [shape: f32[2,32,32], index: 3, kind: input, shape index: {}]
  %s4 = inlined_call_operand.hbm [shape: f32[2,8,32], index: 4, kind: output, shape index: {0}]
  %s5 = inlined_call_operand.vmem [shape: f32[2,8,8,32], index: 5, kind: output, shape index: {1}]
  %6 = xla_tuple %s4, %s5
  %s7 = sld [smem:[#allocation0]]
  $region34: #{_gnn_forward_impl.1} parent=0
    _
  %s9 = ssub.s32 1, %s7
  %s10 = scalar_select 0, %s9, %s7
  $region1: #{_gnn_forward_impl.1} parent=0
    #allocation2 [shape = 'u8[8192]{0}', space=vmem, size = 0x2000, scoped, tag = 'output window, operand 0, single buffered']
    #allocation3 [shape = 's32[1]{0}', space=sflag, size = 0x4, scoped, tag = 'scoped memory for _gnn_forward_impl.1']
    %11 = vsyncpa [#allocation3], 0
    // Predicated region
    $region2: #{_gnn_forward_impl.1} parent=1 // pred_check
      _
    $region3: #{_gnn_forward_impl.1} parent=1 // pred_check_branch
      %13 = sbr.rel (0) target = $region5
    $region4: #{_gnn_forward_impl.1} parent=1 // pred_region
      _
    $region5: #{_gnn_forward_impl.1} parent=1 // pred_fallthru
      _
    // Predicated region
    $region6: #{_gnn_forward_impl.1} parent=1 // pred_check
      _
    $region7: #{_gnn_forward_impl.1} parent=1 // pred_check_branch
      %15 = sbr.rel (0) target = $region9
    $region8: #{_gnn_forward_impl.1} parent=1 // pred_region
      _
    $region9: #{_gnn_forward_impl.1} parent=1 // pred_fallthru
      _
    // Predicated region
    $region10: #{_gnn_forward_impl.1} parent=1 // pred_check
      _
    $region11: #{_gnn_forward_impl.1} parent=1 // pred_check_branch
      %17 = sbr.rel (0) target = $region13
    $region12: #{_gnn_forward_impl.1} parent=1 // pred_region
      _
    $region13: #{_gnn_forward_impl.1} parent=1 // pred_fallthru
      _
    // Predicated region
    $region14: #{_gnn_forward_impl.1} parent=1 // pred_check
      _
    $region15: #{_gnn_forward_impl.1} parent=1 // pred_check_branch
      %19 = sbr.rel (0) target = $region17
    $region16: #{_gnn_forward_impl.1} parent=1 // pred_region
      _
    $region17: #{_gnn_forward_impl.1} parent=1 // pred_fallthru
      _
    %v20 = vld [vmem:[%s0] sm:$0xff]
    %v21 = vld [vmem:[%s0 + $0x8] sm:$0xff]
    %v22 = vld [vmem:[%s1] sm:$0xff]
    %v23 = vld [vmem:[%s1 + $0x8] sm:$0xff]
    %v24 = vld [vmem:[%s1 + $0x10] sm:$0xff]
    %v25 = vld [vmem:[%s1 + $0x18] sm:$0xff]
    %v26 = vld [vmem:[%s1 + $0x20] sm:$0xff]
    %v27 = vld [vmem:[%s1 + $0x28] sm:$0xff]
    %v28 = vld [vmem:[%s1 + $0x30] sm:$0xff]
    %v29 = vld [vmem:[%s1 + $0x38] sm:$0xff]
    %v30 = vld [vmem:[%s1 + $0x40] sm:$0xff]
    %v31 = vld [vmem:[%s1 + $0x48] sm:$0xff]
    %v32 = vld [vmem:[%s1 + $0x50] sm:$0xff]
    %v33 = vld [vmem:[%s1 + $0x58] sm:$0xff]
    %v34 = vld [vmem:[%s1 + $0x60] sm:$0xff]
    %v35 = vld [vmem:[%s1 + $0x68] sm:$0xff]
    %v36 = vld [vmem:[%s1 + $0x70] sm:$0xff]
    %v37 = vld [vmem:[%s1 + $0x78] sm:$0xff]
    %v38 = vld [vmem:[%s2] sm:$0xff]
    %v39 = vld [vmem:[%s2 + $0x8] sm:$0xff]
    %v40 = vld [vmem:[%s2 + $0x10] sm:$0xff]
    %v41 = vld [vmem:[%s2 + $0x18] sm:$0xff]
    %v42 = vld [vmem:[%s3] sm:$0xff]
    %v43 = vld [vmem:[%s3 + $0x8] sm:$0xff]
    %v44 = vld [vmem:[%s3 + $0x10] sm:$0xff]
    %v45 = vld [vmem:[%s3 + $0x18] sm:$0xff]
    %vm46 = vcmask 261120
    %v48 = vsel %vm46, %v20, 0
    %v51 = vsel %vm46, %v21, 0
    %53 = vmatpush.msra.mxu0 0.0
    %54 = vmatpush.msra.mxu0 0.0
    %55 = vmatpush.msra.mxu0 0.0
    %56 = vmatpush.msra.mxu0 0.0
    %57 = vmatpush.msra.mxu0 0.0
    %58 = vmatpush.msra.mxu0 0.0
    %59 = vmatpush.msra.mxu0 0.0
    %60 = vmatpush.msra.mxu0 0.0
    %61 = vmatpush.msra.mxu0 0.0
    %62 = vmatpush.msra.mxu0 0.0
    %63 = vmatpush.msra.mxu0 0.0
    %64 = vmatpush.msra.mxu0 0.0
    %65 = vmatpush.msra.mxu0 %v41
    %66 = vmatpush.msra.mxu0 %v40
    %67 = vmatpush.msra.mxu0 %v39
    %68 = vmatpush.msra.mxu0 %v38
    %69 = vmatmul.f32.gmra.mxu0 %v48
    %v70 = vpop.f32.mrf.mxu0
    %v71 = vadd.f32 0.0, %v70
    %72 = vmatmul.f32.gmra.mxu0 %v51
    %v73 = vpop.f32.mrf.mxu0
    %v74 = vadd.f32 0.0, %v73
    %75 = vdwg.mxu0
    %v77 = vsel %vm46, %v22, 0
    %v80 = vsel %vm46, %v23, 0
    %v83 = vsel %vm46, %v24, 0
    %v86 = vsel %vm46, %v25, 0
    %v89 = vsel %vm46, %v26, 0
    %v92 = vsel %vm46, %v27, 0
    %v95 = vsel %vm46, %v28, 0
    %v98 = vsel %vm46, %v29, 0
    %v101 = vsel %vm46, %v30, 0
    %v104 = vsel %vm46, %v31, 0
    %v107 = vsel %vm46, %v32, 0
    %v110 = vsel %vm46, %v33, 0
    %v113 = vsel %vm46, %v34, 0
    %v116 = vsel %vm46, %v35, 0
    %v119 = vsel %vm46, %v36, 0
    %v122 = vsel %vm46, %v37, 0
    %124 = vmatpush.msra.mxu0 0.0
    %125 = vmatpush.msra.mxu0 0.0
    %126 = vmatpush.msra.mxu0 0.0
    %127 = vmatpush.msra.mxu0 0.0
    %128 = vmatpush.msra.mxu0 0.0
    %129 = vmatpush.msra.mxu0 0.0
    %130 = vmatpush.msra.mxu0 0.0
    %131 = vmatpush.msra.mxu0 0.0
    %132 = vmatpush.msra.mxu0 0.0
    %133 = vmatpush.msra.mxu0 0.0
    %134 = vmatpush.msra.mxu0 0.0
    %135 = vmatpush.msra.mxu0 0.0
    %136 = vmatpush.msra.mxu0 %v45
    %137 = vmatpush.msra.mxu0 %v44
    %138 = vmatpush.msra.mxu0 %v43
    %139 = vmatpush.msra.mxu0 %v42
    %140 = vmatmul.f32.gmra.mxu0 %v77
    %v141 = vpop.f32.mrf.mxu0
    %v142 = vadd.f32 0.0, %v141
    %143 = vmatmul.f32.gmra.mxu0 %v80
    %v144 = vpop.f32.mrf.mxu0
    %v145 = vadd.f32 0.0, %v144
    %146 = vmatmul.f32.gmra.mxu0 %v83
    %v147 = vpop.f32.mrf.mxu0
    %v148 = vadd.f32 0.0, %v147
    %149 = vmatmul.f32.gmra.mxu0 %v86
    %v150 = vpop.f32.mrf.mxu0
    %v151 = vadd.f32 0.0, %v150
    %152 = vmatmul.f32.gmra.mxu0 %v89
    %v153 = vpop.f32.mrf.mxu0
    %v154 = vadd.f32 0.0, %v153
    %155 = vmatmul.f32.gmra.mxu0 %v92
    %v156 = vpop.f32.mrf.mxu0
    %v157 = vadd.f32 0.0, %v156
    %158 = vmatmul.f32.gmra.mxu0 %v95
    %v159 = vpop.f32.mrf.mxu0
    %v160 = vadd.f32 0.0, %v159
    %161 = vmatmul.f32.gmra.mxu0 %v98
    %v162 = vpop.f32.mrf.mxu0
    %v163 = vadd.f32 0.0, %v162
    %164 = vmatmul.f32.gmra.mxu0 %v101
    %v165 = vpop.f32.mrf.mxu0
    %v166 = vadd.f32 0.0, %v165
    %167 = vmatmul.f32.gmra.mxu0 %v104
    %v168 = vpop.f32.mrf.mxu0
    %v169 = vadd.f32 0.0, %v168
    %170 = vmatmul.f32.gmra.mxu0 %v107
    %v171 = vpop.f32.mrf.mxu0
    %v172 = vadd.f32 0.0, %v171
    %173 = vmatmul.f32.gmra.mxu0 %v110
    %v174 = vpop.f32.mrf.mxu0
    %v175 = vadd.f32 0.0, %v174
    %176 = vmatmul.f32.gmra.mxu0 %v113
    %v177 = vpop.f32.mrf.mxu0
    %v178 = vadd.f32 0.0, %v177
    %179 = vmatmul.f32.gmra.mxu0 %v116
    %v180 = vpop.f32.mrf.mxu0
    %v181 = vadd.f32 0.0, %v180
    %182 = vmatmul.f32.gmra.mxu0 %v119
    %v183 = vpop.f32.mrf.mxu0
    %v184 = vadd.f32 0.0, %v183
    %185 = vmatmul.f32.gmra.mxu0 %v122
    %v186 = vpop.f32.mrf.mxu0
    %v187 = vadd.f32 0.0, %v186
    %188 = vdwg.mxu0
    %v191 = vrot.slane %v71, 1
    %v192 = vrot.slane %v71, 2
    %v193 = vrot.slane %v71, 3
    %v194 = vrot.slane %v71, 4
    %v195 = vrot.slane %v71, 5
    %v196 = vrot.slane %v71, 6
    %v197 = vrot.slane %v71, 7
    %v198 = vrot.slane %v74, 1
    %v199 = vrot.slane %v74, 2
    %v200 = vrot.slane %v74, 3
    %v201 = vrot.slane %v74, 4
    %v202 = vrot.slane %v74, 5
    %v203 = vrot.slane %v74, 6
    %v204 = vrot.slane %v74, 7
    %v205 = vperm.slane %v71, 0
    %v206 = vperm.slane %v191, 0
    %v207 = vperm.slane %v192, 0
    %v208 = vperm.slane %v193, 0
    %v209 = vperm.slane %v194, 0
    %v210 = vperm.slane %v195, 0
    %v211 = vperm.slane %v196, 0
    %v212 = vperm.slane %v197, 0
    %v213 = vperm.slane %v74, 0
    %v214 = vperm.slane %v198, 0
    %v215 = vperm.slane %v199, 0
    %v216 = vperm.slane %v200, 0
    %v217 = vperm.slane %v201, 0
    %v218 = vperm.slane %v202, 0
    %v219 = vperm.slane %v203, 0
    %v220 = vperm.slane %v204, 0
    %237 = vrot.lane.b32.xlu0 %v71, 96
    %v238 = vpop.permute.xlu0 %237
    %239 = vrot.lane.b32.xlu0 %v74, 96
    %v240 = vpop.permute.xlu0 %239
    %v243 = vadd.f32 %v205, %v238
    %v244 = vadd.f32 %v206, %v238
    %v245 = vadd.f32 %v207, %v238
    %v246 = vadd.f32 %v208, %v238
    %v247 = vadd.f32 %v209, %v238
    %v248 = vadd.f32 %v210, %v238
    %v249 = vadd.f32 %v211, %v238
    %v250 = vadd.f32 %v212, %v238
    %v251 = vadd.f32 %v213, %v240
    %v252 = vadd.f32 %v214, %v240
    %v253 = vadd.f32 %v215, %v240
    %v254 = vadd.f32 %v216, %v240
    %v255 = vadd.f32 %v217, %v240
    %v256 = vadd.f32 %v218, %v240
    %v257 = vadd.f32 %v219, %v240
    %v258 = vadd.f32 %v220, %v240
    %v259 = vadd.f32 %v243, %v142
    %v260 = vadd.f32 %v244, %v145
    %v261 = vadd.f32 %v245, %v148
    %v262 = vadd.f32 %v246, %v151
    %v263 = vadd.f32 %v247, %v154
    %v264 = vadd.f32 %v248, %v157
    %v265 = vadd.f32 %v249, %v160
    %v266 = vadd.f32 %v250, %v163
    %v267 = vadd.f32 %v251, %v166
    %v268 = vadd.f32 %v252, %v169
    %v269 = vadd.f32 %v253, %v172
    %v270 = vadd.f32 %v254, %v175
    %v271 = vadd.f32 %v255, %v178
    %v272 = vadd.f32 %v256, %v181
    %v273 = vadd.f32 %v257, %v184
    %v274 = vadd.f32 %v258, %v187
    %v275 = vsel %vm46, %v259, 0.0
    %v276 = vsel %vm46, %v267, 0.0
    %v277 = vadd.f32 %v275, %v276
    %278 = vadd.xlane.f32.xlu0 %v277
    %v279 = vpop.xlane.xlu0 %278
    %v280 = vsel %vm46, %v260, 0.0
    %v281 = vsel %vm46, %v268, 0.0
    %v282 = vadd.f32 %v280, %v281
    %283 = vadd.xlane.f32.xlu0 %v282
    %v284 = vpop.xlane.xlu0 %283
    %v285 = vsel %vm46, %v261, 0.0
    %v286 = vsel %vm46, %v269, 0.0
    %v287 = vadd.f32 %v285, %v286
    %288 = vadd.xlane.f32.xlu0 %v287
    %v289 = vpop.xlane.xlu0 %288
    %v290 = vsel %vm46, %v262, 0.0
    %v291 = vsel %vm46, %v270, 0.0
    %v292 = vadd.f32 %v290, %v291
    %293 = vadd.xlane.f32.xlu0 %v292
    %v294 = vpop.xlane.xlu0 %293
    %v295 = vsel %vm46, %v263, 0.0
    %v296 = vsel %vm46, %v271, 0.0
    %v297 = vadd.f32 %v295, %v296
    %298 = vadd.xlane.f32.xlu0 %v297
    %v299 = vpop.xlane.xlu0 %298
    %v300 = vsel %vm46, %v264, 0.0
    %v301 = vsel %vm46, %v272, 0.0
    %v302 = vadd.f32 %v300, %v301
    %303 = vadd.xlane.f32.xlu0 %v302
    %v304 = vpop.xlane.xlu0 %303
    %v305 = vsel %vm46, %v265, 0.0
    %v306 = vsel %vm46, %v273, 0.0
    %v307 = vadd.f32 %v305, %v306
    %308 = vadd.xlane.f32.xlu0 %v307
    %v309 = vpop.xlane.xlu0 %308
    %v310 = vsel %vm46, %v266, 0.0
    %v311 = vsel %vm46, %v274, 0.0
    %v312 = vadd.f32 %v310, %v311
    %313 = vadd.xlane.f32.xlu0 %v312
    %v314 = vpop.xlane.xlu0 %313
    %v315 = vmul.f32 %v279, 0.015625
    %v316 = vmul.f32 %v284, 0.015625
    %v317 = vmul.f32 %v289, 0.015625
    %v318 = vmul.f32 %v294, 0.015625
    %v319 = vmul.f32 %v299, 0.015625
    %v320 = vmul.f32 %v304, 0.015625
    %v321 = vmul.f32 %v309, 0.015625
    %v322 = vmul.f32 %v314, 0.015625
    %v323 = vsub.f32 %v259, %v315
    %v324 = vsub.f32 %v260, %v316
    %v325 = vsub.f32 %v261, %v317
    %v326 = vsub.f32 %v262, %v318
    %v327 = vsub.f32 %v263, %v319
    %v328 = vsub.f32 %v264, %v320
    %v329 = vsub.f32 %v265, %v321
    %v330 = vsub.f32 %v266, %v322
    %v331 = vsub.f32 %v267, %v315
    %v332 = vsub.f32 %v268, %v316
    %v333 = vsub.f32 %v269, %v317
    %v334 = vsub.f32 %v270, %v318
    %v335 = vsub.f32 %v271, %v319
    %v336 = vsub.f32 %v272, %v320
    %v337 = vsub.f32 %v273, %v321
    %v338 = vsub.f32 %v274, %v322
    %v339 = vmul.f32 %v323, %v323
    %v340 = vmul.f32 %v324, %v324
    %v341 = vmul.f32 %v325, %v325
    %v342 = vmul.f32 %v326, %v326
    %v343 = vmul.f32 %v327, %v327
    %v344 = vmul.f32 %v328, %v328
    %v345 = vmul.f32 %v329, %v329
    %v346 = vmul.f32 %v330, %v330
    %v347 = vmul.f32 %v331, %v331
    %v348 = vmul.f32 %v332, %v332
    %v349 = vmul.f32 %v333, %v333
    %v350 = vmul.f32 %v334, %v334
    %v351 = vmul.f32 %v335, %v335
    %v352 = vmul.f32 %v336, %v336
    %v353 = vmul.f32 %v337, %v337
    %v354 = vmul.f32 %v338, %v338
    %v355 = vsel %vm46, %v339, 0.0
    %v356 = vsel %vm46, %v347, 0.0
    %v357 = vadd.f32 %v355, %v356
    %358 = vadd.xlane.f32.xlu0 %v357
    %v359 = vpop.xlane.xlu0 %358
    %v360 = vsel %vm46, %v340, 0.0
    %v361 = vsel %vm46, %v348, 0.0
    %v362 = vadd.f32 %v360, %v361
    %363 = vadd.xlane.f32.xlu0 %v362
    %v364 = vpop.xlane.xlu0 %363
    %v365 = vsel %vm46, %v341, 0.0
    %v366 = vsel %vm46, %v349, 0.0
    %v367 = vadd.f32 %v365, %v366
    %368 = vadd.xlane.f32.xlu0 %v367
    %v369 = vpop.xlane.xlu0 %368
    %v370 = vsel %vm46, %v342, 0.0
    %v371 = vsel %vm46, %v350, 0.0
    %v372 = vadd.f32 %v370, %v371
    %373 = vadd.xlane.f32.xlu0 %v372
    %v374 = vpop.xlane.xlu0 %373
    %v375 = vsel %vm46, %v343, 0.0
    %v376 = vsel %vm46, %v351, 0.0
    %v377 = vadd.f32 %v375, %v376
    %378 = vadd.xlane.f32.xlu0 %v377
    %v379 = vpop.xlane.xlu0 %378
    %v380 = vsel %vm46, %v344, 0.0
    %v381 = vsel %vm46, %v352, 0.0
    %v382 = vadd.f32 %v380, %v381
    %383 = vadd.xlane.f32.xlu0 %v382
    %v384 = vpop.xlane.xlu0 %383
    %v385 = vsel %vm46, %v345, 0.0
    %v386 = vsel %vm46, %v353, 0.0
    %v387 = vadd.f32 %v385, %v386
    %388 = vadd.xlane.f32.xlu0 %v387
    %v389 = vpop.xlane.xlu0 %388
    %v390 = vsel %vm46, %v346, 0.0
    %v391 = vsel %vm46, %v354, 0.0
    %v392 = vadd.f32 %v390, %v391
    %393 = vadd.xlane.f32.xlu0 %v392
    %v394 = vpop.xlane.xlu0 %393
    %v395 = vmul.f32 %v359, 0.015625
    %v396 = vmul.f32 %v364, 0.015625
    %v397 = vmul.f32 %v369, 0.015625
    %v398 = vmul.f32 %v374, 0.015625
    %v399 = vmul.f32 %v379, 0.015625
    %v400 = vmul.f32 %v384, 0.015625
    %v401 = vmul.f32 %v389, 0.015625
    %v402 = vmul.f32 %v394, 0.015625
    %v403 = vadd.f32 %v395, 1e-05
    %v404 = vadd.f32 %v396, 1e-05
    %v405 = vadd.f32 %v397, 1e-05
    %v406 = vadd.f32 %v398, 1e-05
    %v407 = vadd.f32 %v399, 1e-05
    %v408 = vadd.f32 %v400, 1e-05
    %v409 = vadd.f32 %v401, 1e-05
    %v410 = vadd.f32 %v402, 1e-05
    %v411 = vrsqrt.pop %v403
    %v412 = vmul.f32 %v411, %v403
    %v413 = vmul.f32 %v412, %v411
    %v414 = vmul.f32 0.5, %v413
    %v415 = vsub.f32 1.5, %v414
    %v416 = vmul.f32 %v411, %v415
    %vm417 = vweird.f32 %v403
    %vm418 = vweird.f32 %v411
    %vm419 = vmor %vm417, %vm418
    %v420 = vsel %vm419, %v411, %v416
    %v421 = vrsqrt.pop %v404
    %v422 = vmul.f32 %v421, %v404
    %v423 = vmul.f32 %v422, %v421
    %v424 = vmul.f32 0.5, %v423
    %v425 = vsub.f32 1.5, %v424
    %v426 = vmul.f32 %v421, %v425
    %vm427 = vweird.f32 %v404
    %vm428 = vweird.f32 %v421
    %vm429 = vmor %vm427, %vm428
    %v430 = vsel %vm429, %v421, %v426
    %v431 = vrsqrt.pop %v405
    %v432 = vmul.f32 %v431, %v405
    %v433 = vmul.f32 %v432, %v431
    %v434 = vmul.f32 0.5, %v433
    %v435 = vsub.f32 1.5, %v434
    %v436 = vmul.f32 %v431, %v435
    %vm437 = vweird.f32 %v405
    %vm438 = vweird.f32 %v431
    %vm439 = vmor %vm437, %vm438
    %v440 = vsel %vm439, %v431, %v436
    %v441 = vrsqrt.pop %v406
    %v442 = vmul.f32 %v441, %v406
    %v443 = vmul.f32 %v442, %v441
    %v444 = vmul.f32 0.5, %v443
    %v445 = vsub.f32 1.5, %v444
    %v446 = vmul.f32 %v441, %v445
    %vm447 = vweird.f32 %v406
    %vm448 = vweird.f32 %v441
    %vm449 = vmor %vm447, %vm448
    %v450 = vsel %vm449, %v441, %v446
    %v451 = vrsqrt.pop %v407
    %v452 = vmul.f32 %v451, %v407
    %v453 = vmul.f32 %v452, %v451
    %v454 = vmul.f32 0.5, %v453
    %v455 = vsub.f32 1.5, %v454
    %v456 = vmul.f32 %v451, %v455
    %vm457 = vweird.f32 %v407
    %vm458 = vweird.f32 %v451
    %vm459 = vmor %vm457, %vm458
    %v460 = vsel %vm459, %v451, %v456
    %v461 = vrsqrt.pop %v408
    %v462 = vmul.f32 %v461, %v408
    %v463 = vmul.f32 %v462, %v461
    %v464 = vmul.f32 0.5, %v463
    %v465 = vsub.f32 1.5, %v464
    %v466 = vmul.f32 %v461, %v465
    %vm467 = vweird.f32 %v408
    %vm468 = vweird.f32 %v461
    %vm469 = vmor %vm467, %vm468
    %v470 = vsel %vm469, %v461, %v466
    %v471 = vrsqrt.pop %v409
    %v472 = vmul.f32 %v471, %v409
    %v473 = vmul.f32 %v472, %v471
    %v474 = vmul.f32 0.5, %v473
    %v475 = vsub.f32 1.5, %v474
    %v476 = vmul.f32 %v471, %v475
    %vm477 = vweird.f32 %v409
    %vm478 = vweird.f32 %v471
    %vm479 = vmor %vm477, %vm478
    %v480 = vsel %vm479, %v471, %v476
    %v481 = vrsqrt.pop %v410
    %v482 = vmul.f32 %v481, %v410
    %v483 = vmul.f32 %v482, %v481
    %v484 = vmul.f32 0.5, %v483
    %v485 = vsub.f32 1.5, %v484
    %v486 = vmul.f32 %v481, %v485
    %vm487 = vweird.f32 %v410
    %vm488 = vweird.f32 %v481
    %vm489 = vmor %vm487, %vm488
    %v490 = vsel %vm489, %v481, %v486
    %v491 = vmul.f32 %v323, %v420
    %v492 = vmul.f32 %v324, %v430
    %v493 = vmul.f32 %v325, %v440
    %v494 = vmul.f32 %v326, %v450
    %v495 = vmul.f32 %v327, %v460
    %v496 = vmul.f32 %v328, %v470
    %v497 = vmul.f32 %v329, %v480
    %v498 = vmul.f32 %v330, %v490
    %v499 = vmul.f32 %v331, %v420
    %v500 = vmul.f32 %v332, %v430
    %v501 = vmul.f32 %v333, %v440
    %v502 = vmul.f32 %v334, %v450
    %v503 = vmul.f32 %v335, %v460
    %v504 = vmul.f32 %v336, %v470
    %v505 = vmul.f32 %v337, %v480
    %v506 = vmul.f32 %v338, %v490
    %v507 = vmax.f32 %v491, 0.0
    %v508 = vmax.f32 %v492, 0.0
    %v509 = vmax.f32 %v493, 0.0
    %v510 = vmax.f32 %v494, 0.0
    %v511 = vmax.f32 %v495, 0.0
    %v512 = vmax.f32 %v496, 0.0
    %v513 = vmax.f32 %v497, 0.0
    %v514 = vmax.f32 %v498, 0.0
    %v515 = vmax.f32 %v499, 0.0
    %v516 = vmax.f32 %v500, 0.0
    %v517 = vmax.f32 %v501, 0.0
    %v518 = vmax.f32 %v502, 0.0
    %v519 = vmax.f32 %v503, 0.0
    %v520 = vmax.f32 %v504, 0.0
    %v521 = vmax.f32 %v505, 0.0
    %v522 = vmax.f32 %v506, 0.0
    %v523 = vadd.f32 %v22, %v507
    %v524 = vadd.f32 %v23, %v508
    %v525 = vadd.f32 %v24, %v509
    %v526 = vadd.f32 %v25, %v510
    %v527 = vadd.f32 %v26, %v511
    %v528 = vadd.f32 %v27, %v512
    %v529 = vadd.f32 %v28, %v513
    %v530 = vadd.f32 %v29, %v514
    %v531 = vadd.f32 %v30, %v515
    %v532 = vadd.f32 %v31, %v516
    %v533 = vadd.f32 %v32, %v517
    %v534 = vadd.f32 %v33, %v518
    %v535 = vadd.f32 %v34, %v519
    %v536 = vadd.f32 %v35, %v520
    %v537 = vadd.f32 %v36, %v521
    %v538 = vadd.f32 %v37, %v522
    %v539 = vsub.f32 0.0, %v523
    %v540 = vsub.f32 0.0, %v524
    %v541 = vsub.f32 0.0, %v525
    %v542 = vsub.f32 0.0, %v526
    %v543 = vsub.f32 0.0, %v527
    %v544 = vsub.f32 0.0, %v528
    %v545 = vsub.f32 0.0, %v529
    %v546 = vsub.f32 0.0, %v530
    %v547 = vsub.f32 0.0, %v531
    %v548 = vsub.f32 0.0, %v532
    %v549 = vsub.f32 0.0, %v533
    %v550 = vsub.f32 0.0, %v534
    %v551 = vsub.f32 0.0, %v535
    %v552 = vsub.f32 0.0, %v536
    %v553 = vsub.f32 0.0, %v537
    %v554 = vsub.f32 0.0, %v538
    %v555 = vmul.f32 %v539, 1.442695
    %v556 = vpow.pop %v555
    %v557 = vmul.f32 %v540, 1.442695
    %v558 = vpow.pop %v557
    %v559 = vmul.f32 %v541, 1.442695
    %v560 = vpow.pop %v559
    %v561 = vmul.f32 %v542, 1.442695
    %v562 = vpow.pop %v561
    %v563 = vmul.f32 %v543, 1.442695
    %v564 = vpow.pop %v563
    %v565 = vmul.f32 %v544, 1.442695
    %v566 = vpow.pop %v565
    %v567 = vmul.f32 %v545, 1.442695
    %v568 = vpow.pop %v567
    %v569 = vmul.f32 %v546, 1.442695
    %v570 = vpow.pop %v569
    %v571 = vmul.f32 %v547, 1.442695
    %v572 = vpow.pop %v571
    %v573 = vmul.f32 %v548, 1.442695
    %v574 = vpow.pop %v573
    %v575 = vmul.f32 %v549, 1.442695
    %v576 = vpow.pop %v575
    %v577 = vmul.f32 %v550, 1.442695
    %v578 = vpow.pop %v577
    %v579 = vmul.f32 %v551, 1.442695
    %v580 = vpow.pop %v579
    %v581 = vmul.f32 %v552, 1.442695
    %v582 = vpow.pop %v581
    %v583 = vmul.f32 %v553, 1.442695
    %v584 = vpow.pop %v583
    %v585 = vmul.f32 %v554, 1.442695
    %v586 = vpow.pop %v585
    %v587 = vadd.f32 %v556, 1.0
    %v588 = vadd.f32 %v558, 1.0
    %v589 = vadd.f32 %v560, 1.0
    %v590 = vadd.f32 %v562, 1.0
    %v591 = vadd.f32 %v564, 1.0
    %v592 = vadd.f32 %v566, 1.0
    %v593 = vadd.f32 %v568, 1.0
    %v594 = vadd.f32 %v570, 1.0
    %v595 = vadd.f32 %v572, 1.0
    %v596 = vadd.f32 %v574, 1.0
    %v597 = vadd.f32 %v576, 1.0
    %v598 = vadd.f32 %v578, 1.0
    %v599 = vadd.f32 %v580, 1.0
    %v600 = vadd.f32 %v582, 1.0
    %v601 = vadd.f32 %v584, 1.0
    %v602 = vadd.f32 %v586, 1.0
    %v603 = vrcp.pop %v587
    %v604 = vrcp.pop %v588
    %v605 = vrcp.pop %v589
    %v606 = vrcp.pop %v590
    %v607 = vrcp.pop %v591
    %v608 = vrcp.pop %v592
    %v609 = vrcp.pop %v593
    %v610 = vrcp.pop %v594
    %v611 = vrcp.pop %v595
    %v612 = vrcp.pop %v596
    %v613 = vrcp.pop %v597
    %v614 = vrcp.pop %v598
    %v615 = vrcp.pop %v599
    %v616 = vrcp.pop %v600
    %v617 = vrcp.pop %v601
    %v618 = vrcp.pop %v602
    %v619 = vmul.f32 %v603, 1.442695
    %v620 = vpow.pop %v619
    %v621 = vmul.f32 %v604, 1.442695
    %v622 = vpow.pop %v621
    %v623 = vmul.f32 %v605, 1.442695
    %v624 = vpow.pop %v623
    %v625 = vmul.f32 %v606, 1.442695
    %v626 = vpow.pop %v625
    %v627 = vmul.f32 %v607, 1.442695
    %v628 = vpow.pop %v627
    %v629 = vmul.f32 %v608, 1.442695
    %v630 = vpow.pop %v629
    %v631 = vmul.f32 %v609, 1.442695
    %v632 = vpow.pop %v631
    %v633 = vmul.f32 %v610, 1.442695
    %v634 = vpow.pop %v633
    %v635 = vmul.f32 %v611, 1.442695
    %v636 = vpow.pop %v635
    %v637 = vmul.f32 %v612, 1.442695
    %v638 = vpow.pop %v637
    %v639 = vmul.f32 %v613, 1.442695
    %v640 = vpow.pop %v639
    %v641 = vmul.f32 %v614, 1.442695
    %v642 = vpow.pop %v641
    %v643 = vmul.f32 %v615, 1.442695
    %v644 = vpow.pop %v643
    %v645 = vmul.f32 %v616, 1.442695
    %v646 = vpow.pop %v645
    %v647 = vmul.f32 %v617, 1.442695
    %v648 = vpow.pop %v647
    %v649 = vmul.f32 %v618, 1.442695
    %v650 = vpow.pop %v649
    %v651 = vsel %vm46, %v620, 0.0
    %v652 = vrot.slane %v651, 4
    %v653 = vadd.f32 %v651, %v652
    %v654 = vrot.slane %v653, 2
    %v655 = vadd.f32 %v653, %v654
    %v656 = vrot.slane %v655, 1
    %v657 = vadd.f32 %v655, %v656
    %v658 = vsel %vm46, %v622, 0.0
    %v659 = vrot.slane %v658, 4
    %v660 = vadd.f32 %v658, %v659
    %v661 = vrot.slane %v660, 2
    %v662 = vadd.f32 %v660, %v661
    %v663 = vrot.slane %v662, 1
    %v664 = vadd.f32 %v662, %v663
    %v665 = vsel %vm46, %v624, 0.0
    %v666 = vrot.slane %v665, 4
    %v667 = vadd.f32 %v665, %v666
    %v668 = vrot.slane %v667, 2
    %v669 = vadd.f32 %v667, %v668
    %v670 = vrot.slane %v669, 1
    %v671 = vadd.f32 %v669, %v670
    %v672 = vsel %vm46, %v626, 0.0
    %v673 = vrot.slane %v672, 4
    %v674 = vadd.f32 %v672, %v673
    %v675 = vrot.slane %v674, 2
    %v676 = vadd.f32 %v674, %v675
    %v677 = vrot.slane %v676, 1
    %v678 = vadd.f32 %v676, %v677
    %v679 = vsel %vm46, %v628, 0.0
    %v680 = vrot.slane %v679, 4
    %v681 = vadd.f32 %v679, %v680
    %v682 = vrot.slane %v681, 2
    %v683 = vadd.f32 %v681, %v682
    %v684 = vrot.slane %v683, 1
    %v685 = vadd.f32 %v683, %v684
    %v686 = vsel %vm46, %v630, 0.0
    %v687 = vrot.slane %v686, 4
    %v688 = vadd.f32 %v686, %v687
    %v689 = vrot.slane %v688, 2
    %v690 = vadd.f32 %v688, %v689
    %v691 = vrot.slane %v690, 1
    %v692 = vadd.f32 %v690, %v691
    %v693 = vsel %vm46, %v632, 0.0
    %v694 = vrot.slane %v693, 4
    %v695 = vadd.f32 %v693, %v694
    %v696 = vrot.slane %v695, 2
    %v697 = vadd.f32 %v695, %v696
    %v698 = vrot.slane %v697, 1
    %v699 = vadd.f32 %v697, %v698
    %v700 = vsel %vm46, %v634, 0.0
    %v701 = vrot.slane %v700, 4
    %v702 = vadd.f32 %v700, %v701
    %v703 = vrot.slane %v702, 2
    %v704 = vadd.f32 %v702, %v703
    %v705 = vrot.slane %v704, 1
    %v706 = vadd.f32 %v704, %v705
    %v707 = vsel %vm46, %v636, 0.0
    %v708 = vrot.slane %v707, 4
    %v709 = vadd.f32 %v707, %v708
    %v710 = vrot.slane %v709, 2
    %v711 = vadd.f32 %v709, %v710
    %v712 = vrot.slane %v711, 1
    %v713 = vadd.f32 %v711, %v712
    %v714 = vsel %vm46, %v638, 0.0
    %v715 = vrot.slane %v714, 4
    %v716 = vadd.f32 %v714, %v715
    %v717 = vrot.slane %v716, 2
    %v718 = vadd.f32 %v716, %v717
    %v719 = vrot.slane %v718, 1
    %v720 = vadd.f32 %v718, %v719
    %v721 = vsel %vm46, %v640, 0.0
    %v722 = vrot.slane %v721, 4
    %v723 = vadd.f32 %v721, %v722
    %v724 = vrot.slane %v723, 2
    %v725 = vadd.f32 %v723, %v724
    %v726 = vrot.slane %v725, 1
    %v727 = vadd.f32 %v725, %v726
    %v728 = vsel %vm46, %v642, 0.0
    %v729 = vrot.slane %v728, 4
    %v730 = vadd.f32 %v728, %v729
    %v731 = vrot.slane %v730, 2
    %v732 = vadd.f32 %v730, %v731
    %v733 = vrot.slane %v732, 1
    %v734 = vadd.f32 %v732, %v733
    %v735 = vsel %vm46, %v644, 0.0
    %v736 = vrot.slane %v735, 4
    %v737 = vadd.f32 %v735, %v736
    %v738 = vrot.slane %v737, 2
    %v739 = vadd.f32 %v737, %v738
    %v740 = vrot.slane %v739, 1
    %v741 = vadd.f32 %v739, %v740
    %v742 = vsel %vm46, %v646, 0.0
    %v743 = vrot.slane %v742, 4
    %v744 = vadd.f32 %v742, %v743
    %v745 = vrot.slane %v744, 2
    %v746 = vadd.f32 %v744, %v745
    %v747 = vrot.slane %v746, 1
    %v748 = vadd.f32 %v746, %v747
    %v749 = vsel %vm46, %v648, 0.0
    %v750 = vrot.slane %v749, 4
    %v751 = vadd.f32 %v749, %v750
    %v752 = vrot.slane %v751, 2
    %v753 = vadd.f32 %v751, %v752
    %v754 = vrot.slane %v753, 1
    %v755 = vadd.f32 %v753, %v754
    %v756 = vsel %vm46, %v650, 0.0
    %v757 = vrot.slane %v756, 4
    %v758 = vadd.f32 %v756, %v757
    %v759 = vrot.slane %v758, 2
    %v760 = vadd.f32 %v758, %v759
    %v761 = vrot.slane %v760, 1
    %v762 = vadd.f32 %v760, %v761
    %v763 = vrcp.pop %v657
    %v764 = vrcp.pop %v664
    %v765 = vrcp.pop %v671
    %v766 = vrcp.pop %v678
    %v767 = vrcp.pop %v685
    %v768 = vrcp.pop %v692
    %v769 = vrcp.pop %v699
    %v770 = vrcp.pop %v706
    %v771 = vrcp.pop %v713
    %v772 = vrcp.pop %v720
    %v773 = vrcp.pop %v727
    %v774 = vrcp.pop %v734
    %v775 = vrcp.pop %v741
    %v776 = vrcp.pop %v748
    %v777 = vrcp.pop %v755
    %v778 = vrcp.pop %v762
    %v779 = vmul.f32 %v620, %v763
    %v780 = vmul.f32 %v622, %v764
    %v781 = vmul.f32 %v624, %v765
    %v782 = vmul.f32 %v626, %v766
    %v783 = vmul.f32 %v628, %v767
    %v784 = vmul.f32 %v630, %v768
    %v785 = vmul.f32 %v632, %v769
    %v786 = vmul.f32 %v634, %v770
    %v787 = vmul.f32 %v636, %v771
    %v788 = vmul.f32 %v638, %v772
    %v789 = vmul.f32 %v640, %v773
    %v790 = vmul.f32 %v642, %v774
    %v791 = vmul.f32 %v644, %v775
    %v792 = vmul.f32 %v646, %v776
    %v793 = vmul.f32 %v648, %v777
    %v794 = vmul.f32 %v650, %v778
    %795 = vrot.lane.b32.xlu0 %v71, 32
    %v796 = vpop.permute.xlu0 %795
    %797 = vrot.lane.b32.xlu0 %v74, 32
    %v798 = vpop.permute.xlu0 %797
    %v801 = vmul.f32 %v779, %v796
    %v802 = vmul.f32 %v780, %v796
    %v803 = vmul.f32 %v781, %v796
    %v804 = vmul.f32 %v782, %v796
    %v805 = vmul.f32 %v783, %v796
    %v806 = vmul.f32 %v784, %v796
    %v807 = vmul.f32 %v785, %v796
    %v808 = vmul.f32 %v786, %v796
    %v809 = vmul.f32 %v787, %v798
    %v810 = vmul.f32 %v788, %v798
    %v811 = vmul.f32 %v789, %v798
    %v812 = vmul.f32 %v790, %v798
    %v813 = vmul.f32 %v791, %v798
    %v814 = vmul.f32 %v792, %v798
    %v815 = vmul.f32 %v793, %v798
    %v816 = vmul.f32 %v794, %v798
    %v817 = vsel %vm46, %v801, 0.0
    %v818 = vrot.slane %v817, 4
    %v819 = vadd.f32 %v817, %v818
    %v820 = vrot.slane %v819, 2
    %v821 = vadd.f32 %v819, %v820
    %v822 = vrot.slane %v821, 1
    %v823 = vadd.f32 %v821, %v822
    %v824 = vsel %vm46, %v802, 0.0
    %v825 = vrot.slane %v824, 4
    %v826 = vadd.f32 %v824, %v825
    %v827 = vrot.slane %v826, 2
    %v828 = vadd.f32 %v826, %v827
    %v829 = vrot.slane %v828, 1
    %v830 = vadd.f32 %v828, %v829
    %v831 = vsel %vm46, %v803, 0.0
    %v832 = vrot.slane %v831, 4
    %v833 = vadd.f32 %v831, %v832
    %v834 = vrot.slane %v833, 2
    %v835 = vadd.f32 %v833, %v834
    %v836 = vrot.slane %v835, 1
    %v837 = vadd.f32 %v835, %v836
    %v838 = vsel %vm46, %v804, 0.0
    %v839 = vrot.slane %v838, 4
    %v840 = vadd.f32 %v838, %v839
    %v841 = vrot.slane %v840, 2
    %v842 = vadd.f32 %v840, %v841
    %v843 = vrot.slane %v842, 1
    %v844 = vadd.f32 %v842, %v843
    %v845 = vsel %vm46, %v805, 0.0
    %v846 = vrot.slane %v845, 4
    %v847 = vadd.f32 %v845, %v846
    %v848 = vrot.slane %v847, 2
    %v849 = vadd.f32 %v847, %v848
    %v850 = vrot.slane %v849, 1
    %v851 = vadd.f32 %v849, %v850
    %v852 = vsel %vm46, %v806, 0.0
    %v853 = vrot.slane %v852, 4
    %v854 = vadd.f32 %v852, %v853
    %v855 = vrot.slane %v854, 2
    %v856 = vadd.f32 %v854, %v855
    %v857 = vrot.slane %v856, 1
    %v858 = vadd.f32 %v856, %v857
    %v859 = vsel %vm46, %v807, 0.0
    %v860 = vrot.slane %v859, 4
    %v861 = vadd.f32 %v859, %v860
    %v862 = vrot.slane %v861, 2
    %v863 = vadd.f32 %v861, %v862
    %v864 = vrot.slane %v863, 1
    %v865 = vadd.f32 %v863, %v864
    %v866 = vsel %vm46, %v808, 0.0
    %v867 = vrot.slane %v866, 4
    %v868 = vadd.f32 %v866, %v867
    %v869 = vrot.slane %v868, 2
    %v870 = vadd.f32 %v868, %v869
    %v871 = vrot.slane %v870, 1
    %v872 = vadd.f32 %v870, %v871
    %v873 = vsel %vm46, %v809, 0.0
    %v874 = vrot.slane %v873, 4
    %v875 = vadd.f32 %v873, %v874
    %v876 = vrot.slane %v875, 2
    %v877 = vadd.f32 %v875, %v876
    %v878 = vrot.slane %v877, 1
    %v879 = vadd.f32 %v877, %v878
    %v880 = vsel %vm46, %v810, 0.0
    %v881 = vrot.slane %v880, 4
    %v882 = vadd.f32 %v880, %v881
    %v883 = vrot.slane %v882, 2
    %v884 = vadd.f32 %v882, %v883
    %v885 = vrot.slane %v884, 1
    %v886 = vadd.f32 %v884, %v885
    %v887 = vsel %vm46, %v811, 0.0
    %v888 = vrot.slane %v887, 4
    %v889 = vadd.f32 %v887, %v888
    %v890 = vrot.slane %v889, 2
    %v891 = vadd.f32 %v889, %v890
    %v892 = vrot.slane %v891, 1
    %v893 = vadd.f32 %v891, %v892
    %v894 = vsel %vm46, %v812, 0.0
    %v895 = vrot.slane %v894, 4
    %v896 = vadd.f32 %v894, %v895
    %v897 = vrot.slane %v896, 2
    %v898 = vadd.f32 %v896, %v897
    %v899 = vrot.slane %v898, 1
    %v900 = vadd.f32 %v898, %v899
    %v901 = vsel %vm46, %v813, 0.0
    %v902 = vrot.slane %v901, 4
    %v903 = vadd.f32 %v901, %v902
    %v904 = vrot.slane %v903, 2
    %v905 = vadd.f32 %v903, %v904
    %v906 = vrot.slane %v905, 1
    %v907 = vadd.f32 %v905, %v906
    %v908 = vsel %vm46, %v814, 0.0
    %v909 = vrot.slane %v908, 4
    %v910 = vadd.f32 %v908, %v909
    %v911 = vrot.slane %v910, 2
    %v912 = vadd.f32 %v910, %v911
    %v913 = vrot.slane %v912, 1
    %v914 = vadd.f32 %v912, %v913
    %v915 = vsel %vm46, %v815, 0.0
    %v916 = vrot.slane %v915, 4
    %v917 = vadd.f32 %v915, %v916
    %v918 = vrot.slane %v917, 2
    %v919 = vadd.f32 %v917, %v918
    %v920 = vrot.slane %v919, 1
    %v921 = vadd.f32 %v919, %v920
    %v922 = vsel %vm46, %v816, 0.0
    %v923 = vrot.slane %v922, 4
    %v924 = vadd.f32 %v922, %v923
    %v925 = vrot.slane %v924, 2
    %v926 = vadd.f32 %v924, %v925
    %v927 = vrot.slane %v926, 1
    %v928 = vadd.f32 %v926, %v927
    %v929 = vmul.f32 %v823, 0.125
    %v930 = vmul.f32 %v830, 0.125
    %v931 = vmul.f32 %v837, 0.125
    %v932 = vmul.f32 %v844, 0.125
    %v933 = vmul.f32 %v851, 0.125
    %v934 = vmul.f32 %v858, 0.125
    %v935 = vmul.f32 %v865, 0.125
    %v936 = vmul.f32 %v872, 0.125
    %v937 = vmul.f32 %v879, 0.125
    %v938 = vmul.f32 %v886, 0.125
    %v939 = vmul.f32 %v893, 0.125
    %v940 = vmul.f32 %v900, 0.125
    %v941 = vmul.f32 %v907, 0.125
    %v942 = vmul.f32 %v914, 0.125
    %v943 = vmul.f32 %v921, 0.125
    %v944 = vmul.f32 %v928, 0.125
    %vm961 = vcmask 1041409
    %v962 = vsel %vm961, %v930, %v929
    %vm963 = vcmask 1042434
    %v964 = vsel %vm963, %v931, %v962
    %vm965 = vcmask 1043459
    %v966 = vsel %vm965, %v932, %v964
    %vm967 = vcmask 1044484
    %v968 = vsel %vm967, %v933, %v966
    %vm969 = vcmask 1045509
    %v970 = vsel %vm969, %v934, %v968
    %vm971 = vcmask 1046534
    %v972 = vsel %vm971, %v935, %v970
    %vm973 = vcmask 1047559
    %v974 = vsel %vm973, %v936, %v972
    %v975 = vsel %vm961, %v938, %v937
    %v976 = vsel %vm963, %v939, %v975
    %v977 = vsel %vm965, %v940, %v976
    %v978 = vsel %vm967, %v941, %v977
    %v979 = vsel %vm969, %v942, %v978
    %v980 = vsel %vm971, %v943, %v979
    %v981 = vsel %vm973, %v944, %v980
    %982 = vrot.lane.b32.xlu0 %v974, 64
    %v983 = vpop.permute.xlu0 %982
    %984 = vrot.lane.b32.xlu0 %v981, 64
    %v985 = vpop.permute.xlu0 %984
    %v988 = vadd.f32 %v71, %v983
    %v989 = vadd.f32 %v74, %v985
    %992 = vrot.lane.b32.xlu0 %v988, 64
    %v993 = vpop.permute.xlu0 %992
    %994 = vrot.lane.b32.xlu0 %v989, 64
    %v995 = vpop.permute.xlu0 %994
    %v998 = vsel %vm46, %v993, 0.0
    %v999 = vsel %vm46, %v995, 0.0
    %v1000 = vadd.f32 %v998, %v999
    %1001 = vadd.xlane.f32.xlu0 %v1000
    %v1002 = vpop.xlane.xlu0 %1001
    %v1003 = vmul.f32 %v1002, 0.015625
    %v1004 = vsub.f32 %v988, %v1003
    %v1005 = vsub.f32 %v989, %v1003
    %v1006 = vmul.f32 %v1004, %v1004
    %v1007 = vmul.f32 %v1005, %v1005
    %1010 = vrot.lane.b32.xlu0 %v1006, 64
    %v1011 = vpop.permute.xlu0 %1010
    %1012 = vrot.lane.b32.xlu0 %v1007, 64
    %v1013 = vpop.permute.xlu0 %1012
    %v1016 = vsel %vm46, %v1011, 0.0
    %v1017 = vsel %vm46, %v1013, 0.0
    %v1018 = vadd.f32 %v1016, %v1017
    %1019 = vadd.xlane.f32.xlu0 %v1018
    %v1020 = vpop.xlane.xlu0 %1019
    %v1021 = vmul.f32 %v1020, 0.015625
    %v1022 = vadd.f32 %v1021, 1e-05
    %v1023 = vrsqrt.pop %v1022
    %v1024 = vmul.f32 %v1023, %v1022
    %v1025 = vmul.f32 %v1024, %v1023
    %v1026 = vmul.f32 0.5, %v1025
    %v1027 = vsub.f32 1.5, %v1026
    %v1028 = vmul.f32 %v1023, %v1027
    %vm1029 = vweird.f32 %v1022
    %vm1030 = vweird.f32 %v1023
    %vm1031 = vmor %vm1029, %vm1030
    %v1032 = vsel %vm1031, %v1023, %v1028
    %v1033 = vmul.f32 %v1004, %v1032
    %v1034 = vmul.f32 %v1005, %v1032
    %1037 = vrot.lane.b32.xlu0 %v1033, 64
    %v1038 = vpop.permute.xlu0 %1037
    %1039 = vrot.lane.b32.xlu0 %v1034, 64
    %v1040 = vpop.permute.xlu0 %1039
    %v1043 = vadd.f32 %v20, %v1038
    %v1044 = vadd.f32 %v21, %v1040
    %v1045 = vmax.f32 %v1043, 0.0
    %v1046 = vmax.f32 %v1044, 0.0
    %s1047 = scalar_lea.vmem %s2, 32
    %v1048 = vld [vmem:[%s1047] sm:$0xff]
    %v1049 = vld [vmem:[%s1047 + $0x8] sm:$0xff]
    %v1050 = vld [vmem:[%s1047 + $0x10] sm:$0xff]
    %v1051 = vld [vmem:[%s1047 + $0x18] sm:$0xff]
    %s1052 = scalar_lea.vmem %s3, 32
    %v1053 = vld [vmem:[%s1052] sm:$0xff]
    %v1054 = vld [vmem:[%s1052 + $0x8] sm:$0xff]
    %v1055 = vld [vmem:[%s1052 + $0x10] sm:$0xff]
    %v1056 = vld [vmem:[%s1052 + $0x18] sm:$0xff]
    %v1058 = vsel %vm46, %v1045, 0
    %v1061 = vsel %vm46, %v1046, 0
    %1063 = vmatpush.msra.mxu0 0.0
    %1064 = vmatpush.msra.mxu0 0.0
    %1065 = vmatpush.msra.mxu0 0.0
    %1066 = vmatpush.msra.mxu0 0.0
    %1067 = vmatpush.msra.mxu0 0.0
    %1068 = vmatpush.msra.mxu0 0.0
    %1069 = vmatpush.msra.mxu0 0.0
    %1070 = vmatpush.msra.mxu0 0.0
    %1071 = vmatpush.msra.mxu0 0.0
    %1072 = vmatpush.msra.mxu0 0.0
    %1073 = vmatpush.msra.mxu0 0.0
    %1074 = vmatpush.msra.mxu0 0.0
    %1075 = vmatpush.msra.mxu0 %v1051
    %1076 = vmatpush.msra.mxu0 %v1050
    %1077 = vmatpush.msra.mxu0 %v1049
    %1078 = vmatpush.msra.mxu0 %v1048
    %1079 = vmatmul.f32.gmra.mxu0 %v1058
    %v1080 = vpop.f32.mrf.mxu0
    %v1081 = vadd.f32 0.0, %v1080
    %1082 = vmatmul.f32.gmra.mxu0 %v1061
    %v1083 = vpop.f32.mrf.mxu0
    %v1084 = vadd.f32 0.0, %v1083
    %1085 = vdwg.mxu0
    %v1087 = vsel %vm46, %v523, 0
    %v1090 = vsel %vm46, %v524, 0
    %v1093 = vsel %vm46, %v525, 0
    %v1096 = vsel %vm46, %v526, 0
    %v1099 = vsel %vm46, %v527, 0
    %v1102 = vsel %vm46, %v528, 0
    %v1105 = vsel %vm46, %v529, 0
    %v1108 = vsel %vm46, %v530, 0
    %v1111 = vsel %vm46, %v531, 0
    %v1114 = vsel %vm46, %v532, 0
    %v1117 = vsel %vm46, %v533, 0
    %v1120 = vsel %vm46, %v534, 0
    %v1123 = vsel %vm46, %v535, 0
    %v1126 = vsel %vm46, %v536, 0
    %v1129 = vsel %vm46, %v537, 0
    %v1132 = vsel %vm46, %v538, 0
    %1134 = vmatpush.msra.mxu0 0.0
    %1135 = vmatpush.msra.mxu0 0.0
    %1136 = vmatpush.msra.mxu0 0.0
    %1137 = vmatpush.msra.mxu0 0.0
    %1138 = vmatpush.msra.mxu0 0.0
    %1139 = vmatpush.msra.mxu0 0.0
    %1140 = vmatpush.msra.mxu0 0.0
    %1141 = vmatpush.msra.mxu0 0.0
    %1142 = vmatpush.msra.mxu0 0.0
    %1143 = vmatpush.msra.mxu0 0.0
    %1144 = vmatpush.msra.mxu0 0.0
    %1145 = vmatpush.msra.mxu0 0.0
    %1146 = vmatpush.msra.mxu0 %v1056
    %1147 = vmatpush.msra.mxu0 %v1055
    %1148 = vmatpush.msra.mxu0 %v1054
    %1149 = vmatpush.msra.mxu0 %v1053
    %1150 = vmatmul.f32.gmra.mxu0 %v1087
    %v1151 = vpop.f32.mrf.mxu0
    %v1152 = vadd.f32 0.0, %v1151
    %1153 = vmatmul.f32.gmra.mxu0 %v1090
    %v1154 = vpop.f32.mrf.mxu0
    %v1155 = vadd.f32 0.0, %v1154
    %1156 = vmatmul.f32.gmra.mxu0 %v1093
    %v1157 = vpop.f32.mrf.mxu0
    %v1158 = vadd.f32 0.0, %v1157
    %1159 = vmatmul.f32.gmra.mxu0 %v1096
    %v1160 = vpop.f32.mrf.mxu0
    %v1161 = vadd.f32 0.0, %v1160
    %1162 = vmatmul.f32.gmra.mxu0 %v1099
    %v1163 = vpop.f32.mrf.mxu0
    %v1164 = vadd.f32 0.0, %v1163
    %1165 = vmatmul.f32.gmra.mxu0 %v1102
    %v1166 = vpop.f32.mrf.mxu0
    %v1167 = vadd.f32 0.0, %v1166
    %1168 = vmatmul.f32.gmra.mxu0 %v1105
    %v1169 = vpop.f32.mrf.mxu0
    %v1170 = vadd.f32 0.0, %v1169
    %1171 = vmatmul.f32.gmra.mxu0 %v1108
    %v1172 = vpop.f32.mrf.mxu0
    %v1173 = vadd.f32 0.0, %v1172
    %1174 = vmatmul.f32.gmra.mxu0 %v1111
    %v1175 = vpop.f32.mrf.mxu0
    %v1176 = vadd.f32 0.0, %v1175
    %1177 = vmatmul.f32.gmra.mxu0 %v1114
    %v1178 = vpop.f32.mrf.mxu0
    %v1179 = vadd.f32 0.0, %v1178
    %1180 = vmatmul.f32.gmra.mxu0 %v1117
    %v1181 = vpop.f32.mrf.mxu0
    %v1182 = vadd.f32 0.0, %v1181
    %1183 = vmatmul.f32.gmra.mxu0 %v1120
    %v1184 = vpop.f32.mrf.mxu0
    %v1185 = vadd.f32 0.0, %v1184
    %1186 = vmatmul.f32.gmra.mxu0 %v1123
    %v1187 = vpop.f32.mrf.mxu0
    %v1188 = vadd.f32 0.0, %v1187
    %1189 = vmatmul.f32.gmra.mxu0 %v1126
    %v1190 = vpop.f32.mrf.mxu0
    %v1191 = vadd.f32 0.0, %v1190
    %1192 = vmatmul.f32.gmra.mxu0 %v1129
    %v1193 = vpop.f32.mrf.mxu0
    %v1194 = vadd.f32 0.0, %v1193
    %1195 = vmatmul.f32.gmra.mxu0 %v1132
    %v1196 = vpop.f32.mrf.mxu0
    %v1197 = vadd.f32 0.0, %v1196
    %1198 = vdwg.mxu0
    %v1201 = vrot.slane %v1081, 1
    %v1202 = vrot.slane %v1081, 2
    %v1203 = vrot.slane %v1081, 3
    %v1204 = vrot.slane %v1081, 4
    %v1205 = vrot.slane %v1081, 5
    %v1206 = vrot.slane %v1081, 6
    %v1207 = vrot.slane %v1081, 7
    %v1208 = vrot.slane %v1084, 1
    %v1209 = vrot.slane %v1084, 2
    %v1210 = vrot.slane %v1084, 3
    %v1211 = vrot.slane %v1084, 4
    %v1212 = vrot.slane %v1084, 5
    %v1213 = vrot.slane %v1084, 6
    %v1214 = vrot.slane %v1084, 7
    %v1215 = vperm.slane %v1081, 0
    %v1216 = vperm.slane %v1201, 0
    %v1217 = vperm.slane %v1202, 0
    %v1218 = vperm.slane %v1203, 0
    %v1219 = vperm.slane %v1204, 0
    %v1220 = vperm.slane %v1205, 0
    %v1221 = vperm.slane %v1206, 0
    %v1222 = vperm.slane %v1207, 0
    %v1223 = vperm.slane %v1084, 0
    %v1224 = vperm.slane %v1208, 0
    %v1225 = vperm.slane %v1209, 0
    %v1226 = vperm.slane %v1210, 0
    %v1227 = vperm.slane %v1211, 0
    %v1228 = vperm.slane %v1212, 0
    %v1229 = vperm.slane %v1213, 0
    %v1230 = vperm.slane %v1214, 0
    %1247 = vrot.lane.b32.xlu0 %v1081, 96
    %v1248 = vpop.permute.xlu0 %1247
    %1249 = vrot.lane.b32.xlu0 %v1084, 96
    %v1250 = vpop.permute.xlu0 %1249
    %v1253 = vadd.f32 %v1215, %v1248
    %v1254 = vadd.f32 %v1216, %v1248
    %v1255 = vadd.f32 %v1217, %v1248
    %v1256 = vadd.f32 %v1218, %v1248
    %v1257 = vadd.f32 %v1219, %v1248
    %v1258 = vadd.f32 %v1220, %v1248
    %v1259 = vadd.f32 %v1221, %v1248
    %v1260 = vadd.f32 %v1222, %v1248
    %v1261 = vadd.f32 %v1223, %v1250
    %v1262 = vadd.f32 %v1224, %v1250
    %v1263 = vadd.f32 %v1225, %v1250
    %v1264 = vadd.f32 %v1226, %v1250
    %v1265 = vadd.f32 %v1227, %v1250
    %v1266 = vadd.f32 %v1228, %v1250
    %v1267 = vadd.f32 %v1229, %v1250
    %v1268 = vadd.f32 %v1230, %v1250
    %v1269 = vadd.f32 %v1253, %v1152
    %v1270 = vadd.f32 %v1254, %v1155
    %v1271 = vadd.f32 %v1255, %v1158
    %v1272 = vadd.f32 %v1256, %v1161
    %v1273 = vadd.f32 %v1257, %v1164
    %v1274 = vadd.f32 %v1258, %v1167
    %v1275 = vadd.f32 %v1259, %v1170
    %v1276 = vadd.f32 %v1260, %v1173
    %v1277 = vadd.f32 %v1261, %v1176
    %v1278 = vadd.f32 %v1262, %v1179
    %v1279 = vadd.f32 %v1263, %v1182
    %v1280 = vadd.f32 %v1264, %v1185
    %v1281 = vadd.f32 %v1265, %v1188
    %v1282 = vadd.f32 %v1266, %v1191
    %v1283 = vadd.f32 %v1267, %v1194
    %v1284 = vadd.f32 %v1268, %v1197
    %v1285 = vsel %vm46, %v1269, 0.0
    %v1286 = vsel %vm46, %v1277, 0.0
    %v1287 = vadd.f32 %v1285, %v1286
    %1288 = vadd.xlane.f32.xlu0 %v1287
    %v1289 = vpop.xlane.xlu0 %1288
    %v1290 = vsel %vm46, %v1270, 0.0
    %v1291 = vsel %vm46, %v1278, 0.0
    %v1292 = vadd.f32 %v1290, %v1291
    %1293 = vadd.xlane.f32.xlu0 %v1292
    %v1294 = vpop.xlane.xlu0 %1293
    %v1295 = vsel %vm46, %v1271, 0.0
    %v1296 = vsel %vm46, %v1279, 0.0
    %v1297 = vadd.f32 %v1295, %v1296
    %1298 = vadd.xlane.f32.xlu0 %v1297
    %v1299 = vpop.xlane.xlu0 %1298
    %v1300 = vsel %vm46, %v1272, 0.0
    %v1301 = vsel %vm46, %v1280, 0.0
    %v1302 = vadd.f32 %v1300, %v1301
    %1303 = vadd.xlane.f32.xlu0 %v1302
    %v1304 = vpop.xlane.xlu0 %1303
    %v1305 = vsel %vm46, %v1273, 0.0
    %v1306 = vsel %vm46, %v1281, 0.0
    %v1307 = vadd.f32 %v1305, %v1306
    %1308 = vadd.xlane.f32.xlu0 %v1307
    %v1309 = vpop.xlane.xlu0 %1308
    %v1310 = vsel %vm46, %v1274, 0.0
    %v1311 = vsel %vm46, %v1282, 0.0
    %v1312 = vadd.f32 %v1310, %v1311
    %1313 = vadd.xlane.f32.xlu0 %v1312
    %v1314 = vpop.xlane.xlu0 %1313
    %v1315 = vsel %vm46, %v1275, 0.0
    %v1316 = vsel %vm46, %v1283, 0.0
    %v1317 = vadd.f32 %v1315, %v1316
    %1318 = vadd.xlane.f32.xlu0 %v1317
    %v1319 = vpop.xlane.xlu0 %1318
    %v1320 = vsel %vm46, %v1276, 0.0
    %v1321 = vsel %vm46, %v1284, 0.0
    %v1322 = vadd.f32 %v1320, %v1321
    %1323 = vadd.xlane.f32.xlu0 %v1322
    %v1324 = vpop.xlane.xlu0 %1323
    %v1325 = vmul.f32 %v1289, 0.015625
    %v1326 = vmul.f32 %v1294, 0.015625
    %v1327 = vmul.f32 %v1299, 0.015625
    %v1328 = vmul.f32 %v1304, 0.015625
    %v1329 = vmul.f32 %v1309, 0.015625
    %v1330 = vmul.f32 %v1314, 0.015625
    %v1331 = vmul.f32 %v1319, 0.015625
    %v1332 = vmul.f32 %v1324, 0.015625
    %v1333 = vsub.f32 %v1269, %v1325
    %v1334 = vsub.f32 %v1270, %v1326
    %v1335 = vsub.f32 %v1271, %v1327
    %v1336 = vsub.f32 %v1272, %v1328
    %v1337 = vsub.f32 %v1273, %v1329
    %v1338 = vsub.f32 %v1274, %v1330
    %v1339 = vsub.f32 %v1275, %v1331
    %v1340 = vsub.f32 %v1276, %v1332
    %v1341 = vsub.f32 %v1277, %v1325
    %v1342 = vsub.f32 %v1278, %v1326
    %v1343 = vsub.f32 %v1279, %v1327
    %v1344 = vsub.f32 %v1280, %v1328
    %v1345 = vsub.f32 %v1281, %v1329
    %v1346 = vsub.f32 %v1282, %v1330
    %v1347 = vsub.f32 %v1283, %v1331
    %v1348 = vsub.f32 %v1284, %v1332
    %v1349 = vmul.f32 %v1333, %v1333
    %v1350 = vmul.f32 %v1334, %v1334
    %v1351 = vmul.f32 %v1335, %v1335
    %v1352 = vmul.f32 %v1336, %v1336
    %v1353 = vmul.f32 %v1337, %v1337
    %v1354 = vmul.f32 %v1338, %v1338
    %v1355 = vmul.f32 %v1339, %v1339
    %v1356 = vmul.f32 %v1340, %v1340
    %v1357 = vmul.f32 %v1341, %v1341
    %v1358 = vmul.f32 %v1342, %v1342
    %v1359 = vmul.f32 %v1343, %v1343
    %v1360 = vmul.f32 %v1344, %v1344
    %v1361 = vmul.f32 %v1345, %v1345
    %v1362 = vmul.f32 %v1346, %v1346
    %v1363 = vmul.f32 %v1347, %v1347
    %v1364 = vmul.f32 %v1348, %v1348
    %v1365 = vsel %vm46, %v1349, 0.0
    %v1366 = vsel %vm46, %v1357, 0.0
    %v1367 = vadd.f32 %v1365, %v1366
    %1368 = vadd.xlane.f32.xlu0 %v1367
    %v1369 = vpop.xlane.xlu0 %1368
    %v1370 = vsel %vm46, %v1350, 0.0
    %v1371 = vsel %vm46, %v1358, 0.0
    %v1372 = vadd.f32 %v1370, %v1371
    %1373 = vadd.xlane.f32.xlu0 %v1372
    %v1374 = vpop.xlane.xlu0 %1373
    %v1375 = vsel %vm46, %v1351, 0.0
    %v1376 = vsel %vm46, %v1359, 0.0
    %v1377 = vadd.f32 %v1375, %v1376
    %1378 = vadd.xlane.f32.xlu0 %v1377
    %v1379 = vpop.xlane.xlu0 %1378
    %v1380 = vsel %vm46, %v1352, 0.0
    %v1381 = vsel %vm46, %v1360, 0.0
    %v1382 = vadd.f32 %v1380, %v1381
    %1383 = vadd.xlane.f32.xlu0 %v1382
    %v1384 = vpop.xlane.xlu0 %1383
    %v1385 = vsel %vm46, %v1353, 0.0
    %v1386 = vsel %vm46, %v1361, 0.0
    %v1387 = vadd.f32 %v1385, %v1386
    %1388 = vadd.xlane.f32.xlu0 %v1387
    %v1389 = vpop.xlane.xlu0 %1388
    %v1390 = vsel %vm46, %v1354, 0.0
    %v1391 = vsel %vm46, %v1362, 0.0
    %v1392 = vadd.f32 %v1390, %v1391
    %1393 = vadd.xlane.f32.xlu0 %v1392
    %v1394 = vpop.xlane.xlu0 %1393
    %v1395 = vsel %vm46, %v1355, 0.0
    %v1396 = vsel %vm46, %v1363, 0.0
    %v1397 = vadd.f32 %v1395, %v1396
    %1398 = vadd.xlane.f32.xlu0 %v1397
    %v1399 = vpop.xlane.xlu0 %1398
    %v1400 = vsel %vm46, %v1356, 0.0
    %v1401 = vsel %vm46, %v1364, 0.0
    %v1402 = vadd.f32 %v1400, %v1401
    %1403 = vadd.xlane.f32.xlu0 %v1402
    %v1404 = vpop.xlane.xlu0 %1403
    %v1405 = vmul.f32 %v1369, 0.015625
    %v1406 = vmul.f32 %v1374, 0.015625
    %v1407 = vmul.f32 %v1379, 0.015625
    %v1408 = vmul.f32 %v1384, 0.015625
    %v1409 = vmul.f32 %v1389, 0.015625
    %v1410 = vmul.f32 %v1394, 0.015625
    %v1411 = vmul.f32 %v1399, 0.015625
    %v1412 = vmul.f32 %v1404, 0.015625
    %v1413 = vadd.f32 %v1405, 1e-05
    %v1414 = vadd.f32 %v1406, 1e-05
    %v1415 = vadd.f32 %v1407, 1e-05
    %v1416 = vadd.f32 %v1408, 1e-05
    %v1417 = vadd.f32 %v1409, 1e-05
    %v1418 = vadd.f32 %v1410, 1e-05
    %v1419 = vadd.f32 %v1411, 1e-05
    %v1420 = vadd.f32 %v1412, 1e-05
    %v1421 = vrsqrt.pop %v1413
    %v1422 = vmul.f32 %v1421, %v1413
    %v1423 = vmul.f32 %v1422, %v1421
    %v1424 = vmul.f32 0.5, %v1423
    %v1425 = vsub.f32 1.5, %v1424
    %v1426 = vmul.f32 %v1421, %v1425
    %vm1427 = vweird.f32 %v1413
    %vm1428 = vweird.f32 %v1421
    %vm1429 = vmor %vm1427, %vm1428
    %v1430 = vsel %vm1429, %v1421, %v1426
    %v1431 = vrsqrt.pop %v1414
    %v1432 = vmul.f32 %v1431, %v1414
    %v1433 = vmul.f32 %v1432, %v1431
    %v1434 = vmul.f32 0.5, %v1433
    %v1435 = vsub.f32 1.5, %v1434
    %v1436 = vmul.f32 %v1431, %v1435
    %vm1437 = vweird.f32 %v1414
    %vm1438 = vweird.f32 %v1431
    %vm1439 = vmor %vm1437, %vm1438
    %v1440 = vsel %vm1439, %v1431, %v1436
    %v1441 = vrsqrt.pop %v1415
    %v1442 = vmul.f32 %v1441, %v1415
    %v1443 = vmul.f32 %v1442, %v1441
    %v1444 = vmul.f32 0.5, %v1443
    %v1445 = vsub.f32 1.5, %v1444
    %v1446 = vmul.f32 %v1441, %v1445
    %vm1447 = vweird.f32 %v1415
    %vm1448 = vweird.f32 %v1441
    %vm1449 = vmor %vm1447, %vm1448
    %v1450 = vsel %vm1449, %v1441, %v1446
    %v1451 = vrsqrt.pop %v1416
    %v1452 = vmul.f32 %v1451, %v1416
    %v1453 = vmul.f32 %v1452, %v1451
    %v1454 = vmul.f32 0.5, %v1453
    %v1455 = vsub.f32 1.5, %v1454
    %v1456 = vmul.f32 %v1451, %v1455
    %vm1457 = vweird.f32 %v1416
    %vm1458 = vweird.f32 %v1451
    %vm1459 = vmor %vm1457, %vm1458
    %v1460 = vsel %vm1459, %v1451, %v1456
    %v1461 = vrsqrt.pop %v1417
    %v1462 = vmul.f32 %v1461, %v1417
    %v1463 = vmul.f32 %v1462, %v1461
    %v1464 = vmul.f32 0.5, %v1463
    %v1465 = vsub.f32 1.5, %v1464
    %v1466 = vmul.f32 %v1461, %v1465
    %vm1467 = vweird.f32 %v1417
    %vm1468 = vweird.f32 %v1461
    %vm1469 = vmor %vm1467, %vm1468
    %v1470 = vsel %vm1469, %v1461, %v1466
    %v1471 = vrsqrt.pop %v1418
    %v1472 = vmul.f32 %v1471, %v1418
    %v1473 = vmul.f32 %v1472, %v1471
    %v1474 = vmul.f32 0.5, %v1473
    %v1475 = vsub.f32 1.5, %v1474
    %v1476 = vmul.f32 %v1471, %v1475
    %vm1477 = vweird.f32 %v1418
    %vm1478 = vweird.f32 %v1471
    %vm1479 = vmor %vm1477, %vm1478
    %v1480 = vsel %vm1479, %v1471, %v1476
    %v1481 = vrsqrt.pop %v1419
    %v1482 = vmul.f32 %v1481, %v1419
    %v1483 = vmul.f32 %v1482, %v1481
    %v1484 = vmul.f32 0.5, %v1483
    %v1485 = vsub.f32 1.5, %v1484
    %v1486 = vmul.f32 %v1481, %v1485
    %vm1487 = vweird.f32 %v1419
    %vm1488 = vweird.f32 %v1481
    %vm1489 = vmor %vm1487, %vm1488
    %v1490 = vsel %vm1489, %v1481, %v1486
    %v1491 = vrsqrt.pop %v1420
    %v1492 = vmul.f32 %v1491, %v1420
    %v1493 = vmul.f32 %v1492, %v1491
    %v1494 = vmul.f32 0.5, %v1493
    %v1495 = vsub.f32 1.5, %v1494
    %v1496 = vmul.f32 %v1491, %v1495
    %vm1497 = vweird.f32 %v1420
    %vm1498 = vweird.f32 %v1491
    %vm1499 = vmor %vm1497, %vm1498
    %v1500 = vsel %vm1499, %v1491, %v1496
    %v1501 = vmul.f32 %v1333, %v1430
    %v1502 = vmul.f32 %v1334, %v1440
    %v1503 = vmul.f32 %v1335, %v1450
    %v1504 = vmul.f32 %v1336, %v1460
    %v1505 = vmul.f32 %v1337, %v1470
    %v1506 = vmul.f32 %v1338, %v1480
    %v1507 = vmul.f32 %v1339, %v1490
    %v1508 = vmul.f32 %v1340, %v1500
    %v1509 = vmul.f32 %v1341, %v1430
    %v1510 = vmul.f32 %v1342, %v1440
    %v1511 = vmul.f32 %v1343, %v1450
    %v1512 = vmul.f32 %v1344, %v1460
    %v1513 = vmul.f32 %v1345, %v1470
    %v1514 = vmul.f32 %v1346, %v1480
    %v1515 = vmul.f32 %v1347, %v1490
    %v1516 = vmul.f32 %v1348, %v1500
    %v1517 = vmax.f32 %v1501, 0.0
    %v1518 = vmax.f32 %v1502, 0.0
    %v1519 = vmax.f32 %v1503, 0.0
    %v1520 = vmax.f32 %v1504, 0.0
    %v1521 = vmax.f32 %v1505, 0.0
    %v1522 = vmax.f32 %v1506, 0.0
    %v1523 = vmax.f32 %v1507, 0.0
    %v1524 = vmax.f32 %v1508, 0.0
    %v1525 = vmax.f32 %v1509, 0.0
    %v1526 = vmax.f32 %v1510, 0.0
    %v1527 = vmax.f32 %v1511, 0.0
    %v1528 = vmax.f32 %v1512, 0.0
    %v1529 = vmax.f32 %v1513, 0.0
    %v1530 = vmax.f32 %v1514, 0.0
    %v1531 = vmax.f32 %v1515, 0.0
    %v1532 = vmax.f32 %v1516, 0.0
    %v1533 = vadd.f32 %v523, %v1517
    %v1534 = vadd.f32 %v524, %v1518
    %v1535 = vadd.f32 %v525, %v1519
    %v1536 = vadd.f32 %v526, %v1520
    %v1537 = vadd.f32 %v527, %v1521
    %v1538 = vadd.f32 %v528, %v1522
    %v1539 = vadd.f32 %v529, %v1523
    %v1540 = vadd.f32 %v530, %v1524
    %v1541 = vadd.f32 %v531, %v1525
    %v1542 = vadd.f32 %v532, %v1526
    %v1543 = vadd.f32 %v533, %v1527
    %v1544 = vadd.f32 %v534, %v1528
    %v1545 = vadd.f32 %v535, %v1529
    %v1546 = vadd.f32 %v536, %v1530
    %v1547 = vadd.f32 %v537, %v1531
    %v1548 = vadd.f32 %v538, %v1532
    %v1549 = vsub.f32 0.0, %v1533
    %v1550 = vsub.f32 0.0, %v1534
    %v1551 = vsub.f32 0.0, %v1535
    %v1552 = vsub.f32 0.0, %v1536
    %v1553 = vsub.f32 0.0, %v1537
    %v1554 = vsub.f32 0.0, %v1538
    %v1555 = vsub.f32 0.0, %v1539
    %v1556 = vsub.f32 0.0, %v1540
    %v1557 = vsub.f32 0.0, %v1541
    %v1558 = vsub.f32 0.0, %v1542
    %v1559 = vsub.f32 0.0, %v1543
    %v1560 = vsub.f32 0.0, %v1544
    %v1561 = vsub.f32 0.0, %v1545
    %v1562 = vsub.f32 0.0, %v1546
    %v1563 = vsub.f32 0.0, %v1547
    %v1564 = vsub.f32 0.0, %v1548
    %v1565 = vmul.f32 %v1549, 1.442695
    %v1566 = vpow.pop %v1565
    %v1567 = vmul.f32 %v1550, 1.442695
    %v1568 = vpow.pop %v1567
    %v1569 = vmul.f32 %v1551, 1.442695
    %v1570 = vpow.pop %v1569
    %v1571 = vmul.f32 %v1552, 1.442695
    %v1572 = vpow.pop %v1571
    %v1573 = vmul.f32 %v1553, 1.442695
    %v1574 = vpow.pop %v1573
    %v1575 = vmul.f32 %v1554, 1.442695
    %v1576 = vpow.pop %v1575
    %v1577 = vmul.f32 %v1555, 1.442695
    %v1578 = vpow.pop %v1577
    %v1579 = vmul.f32 %v1556, 1.442695
    %v1580 = vpow.pop %v1579
    %v1581 = vmul.f32 %v1557, 1.442695
    %v1582 = vpow.pop %v1581
    %v1583 = vmul.f32 %v1558, 1.442695
    %v1584 = vpow.pop %v1583
    %v1585 = vmul.f32 %v1559, 1.442695
    %v1586 = vpow.pop %v1585
    %v1587 = vmul.f32 %v1560, 1.442695
    %v1588 = vpow.pop %v1587
    %v1589 = vmul.f32 %v1561, 1.442695
    %v1590 = vpow.pop %v1589
    %v1591 = vmul.f32 %v1562, 1.442695
    %v1592 = vpow.pop %v1591
    %v1593 = vmul.f32 %v1563, 1.442695
    %v1594 = vpow.pop %v1593
    %v1595 = vmul.f32 %v1564, 1.442695
    %v1596 = vpow.pop %v1595
    %v1597 = vadd.f32 %v1566, 1.0
    %v1598 = vadd.f32 %v1568, 1.0
    %v1599 = vadd.f32 %v1570, 1.0
    %v1600 = vadd.f32 %v1572, 1.0
    %v1601 = vadd.f32 %v1574, 1.0
    %v1602 = vadd.f32 %v1576, 1.0
    %v1603 = vadd.f32 %v1578, 1.0
    %v1604 = vadd.f32 %v1580, 1.0
    %v1605 = vadd.f32 %v1582, 1.0
    %v1606 = vadd.f32 %v1584, 1.0
    %v1607 = vadd.f32 %v1586, 1.0
    %v1608 = vadd.f32 %v1588, 1.0
    %v1609 = vadd.f32 %v1590, 1.0
    %v1610 = vadd.f32 %v1592, 1.0
    %v1611 = vadd.f32 %v1594, 1.0
    %v1612 = vadd.f32 %v1596, 1.0
    %v1613 = vrcp.pop %v1597
    %v1614 = vrcp.pop %v1598
    %v1615 = vrcp.pop %v1599
    %v1616 = vrcp.pop %v1600
    %v1617 = vrcp.pop %v1601
    %v1618 = vrcp.pop %v1602
    %v1619 = vrcp.pop %v1603
    %v1620 = vrcp.pop %v1604
    %v1621 = vrcp.pop %v1605
    %v1622 = vrcp.pop %v1606
    %v1623 = vrcp.pop %v1607
    %v1624 = vrcp.pop %v1608
    %v1625 = vrcp.pop %v1609
    %v1626 = vrcp.pop %v1610
    %v1627 = vrcp.pop %v1611
    %v1628 = vrcp.pop %v1612
    %v1629 = vmul.f32 %v1613, 1.442695
    %v1630 = vpow.pop %v1629
    %v1631 = vmul.f32 %v1614, 1.442695
    %v1632 = vpow.pop %v1631
    %v1633 = vmul.f32 %v1615, 1.442695
    %v1634 = vpow.pop %v1633
    %v1635 = vmul.f32 %v1616, 1.442695
    %v1636 = vpow.pop %v1635
    %v1637 = vmul.f32 %v1617, 1.442695
    %v1638 = vpow.pop %v1637
    %v1639 = vmul.f32 %v1618, 1.442695
    %v1640 = vpow.pop %v1639
    %v1641 = vmul.f32 %v1619, 1.442695
    %v1642 = vpow.pop %v1641
    %v1643 = vmul.f32 %v1620, 1.442695
    %v1644 = vpow.pop %v1643
    %v1645 = vmul.f32 %v1621, 1.442695
    %v1646 = vpow.pop %v1645
    %v1647 = vmul.f32 %v1622, 1.442695
    %v1648 = vpow.pop %v1647
    %v1649 = vmul.f32 %v1623, 1.442695
    %v1650 = vpow.pop %v1649
    %v1651 = vmul.f32 %v1624, 1.442695
    %v1652 = vpow.pop %v1651
    %v1653 = vmul.f32 %v1625, 1.442695
    %v1654 = vpow.pop %v1653
    %v1655 = vmul.f32 %v1626, 1.442695
    %v1656 = vpow.pop %v1655
    %v1657 = vmul.f32 %v1627, 1.442695
    %v1658 = vpow.pop %v1657
    %v1659 = vmul.f32 %v1628, 1.442695
    %v1660 = vpow.pop %v1659
    %v1661 = vsel %vm46, %v1630, 0.0
    %v1662 = vrot.slane %v1661, 4
    %v1663 = vadd.f32 %v1661, %v1662
    %v1664 = vrot.slane %v1663, 2
    %v1665 = vadd.f32 %v1663, %v1664
    %v1666 = vrot.slane %v1665, 1
    %v1667 = vadd.f32 %v1665, %v1666
    %v1668 = vsel %vm46, %v1632, 0.0
    %v1669 = vrot.slane %v1668, 4
    %v1670 = vadd.f32 %v1668, %v1669
    %v1671 = vrot.slane %v1670, 2
    %v1672 = vadd.f32 %v1670, %v1671
    %v1673 = vrot.slane %v1672, 1
    %v1674 = vadd.f32 %v1672, %v1673
    %v1675 = vsel %vm46, %v1634, 0.0
    %v1676 = vrot.slane %v1675, 4
    %v1677 = vadd.f32 %v1675, %v1676
    %v1678 = vrot.slane %v1677, 2
    %v1679 = vadd.f32 %v1677, %v1678
    %v1680 = vrot.slane %v1679, 1
    %v1681 = vadd.f32 %v1679, %v1680
    %v1682 = vsel %vm46, %v1636, 0.0
    %v1683 = vrot.slane %v1682, 4
    %v1684 = vadd.f32 %v1682, %v1683
    %v1685 = vrot.slane %v1684, 2
    %v1686 = vadd.f32 %v1684, %v1685
    %v1687 = vrot.slane %v1686, 1
    %v1688 = vadd.f32 %v1686, %v1687
    %v1689 = vsel %vm46, %v1638, 0.0
    %v1690 = vrot.slane %v1689, 4
    %v1691 = vadd.f32 %v1689, %v1690
    %v1692 = vrot.slane %v1691, 2
    %v1693 = vadd.f32 %v1691, %v1692
    %v1694 = vrot.slane %v1693, 1
    %v1695 = vadd.f32 %v1693, %v1694
    %v1696 = vsel %vm46, %v1640, 0.0
    %v1697 = vrot.slane %v1696, 4
    %v1698 = vadd.f32 %v1696, %v1697
    %v1699 = vrot.slane %v1698, 2
    %v1700 = vadd.f32 %v1698, %v1699
    %v1701 = vrot.slane %v1700, 1
    %v1702 = vadd.f32 %v1700, %v1701
    %v1703 = vsel %vm46, %v1642, 0.0
    %v1704 = vrot.slane %v1703, 4
    %v1705 = vadd.f32 %v1703, %v1704
    %v1706 = vrot.slane %v1705, 2
    %v1707 = vadd.f32 %v1705, %v1706
    %v1708 = vrot.slane %v1707, 1
    %v1709 = vadd.f32 %v1707, %v1708
    %v1710 = vsel %vm46, %v1644, 0.0
    %v1711 = vrot.slane %v1710, 4
    %v1712 = vadd.f32 %v1710, %v1711
    %v1713 = vrot.slane %v1712, 2
    %v1714 = vadd.f32 %v1712, %v1713
    %v1715 = vrot.slane %v1714, 1
    %v1716 = vadd.f32 %v1714, %v1715
    %v1717 = vsel %vm46, %v1646, 0.0
    %v1718 = vrot.slane %v1717, 4
    %v1719 = vadd.f32 %v1717, %v1718
    %v1720 = vrot.slane %v1719, 2
    %v1721 = vadd.f32 %v1719, %v1720
    %v1722 = vrot.slane %v1721, 1
    %v1723 = vadd.f32 %v1721, %v1722
    %v1724 = vsel %vm46, %v1648, 0.0
    %v1725 = vrot.slane %v1724, 4
    %v1726 = vadd.f32 %v1724, %v1725
    %v1727 = vrot.slane %v1726, 2
    %v1728 = vadd.f32 %v1726, %v1727
    %v1729 = vrot.slane %v1728, 1
    %v1730 = vadd.f32 %v1728, %v1729
    %v1731 = vsel %vm46, %v1650, 0.0
    %v1732 = vrot.slane %v1731, 4
    %v1733 = vadd.f32 %v1731, %v1732
    %v1734 = vrot.slane %v1733, 2
    %v1735 = vadd.f32 %v1733, %v1734
    %v1736 = vrot.slane %v1735, 1
    %v1737 = vadd.f32 %v1735, %v1736
    %v1738 = vsel %vm46, %v1652, 0.0
    %v1739 = vrot.slane %v1738, 4
    %v1740 = vadd.f32 %v1738, %v1739
    %v1741 = vrot.slane %v1740, 2
    %v1742 = vadd.f32 %v1740, %v1741
    %v1743 = vrot.slane %v1742, 1
    %v1744 = vadd.f32 %v1742, %v1743
    %v1745 = vsel %vm46, %v1654, 0.0
    %v1746 = vrot.slane %v1745, 4
    %v1747 = vadd.f32 %v1745, %v1746
    %v1748 = vrot.slane %v1747, 2
    %v1749 = vadd.f32 %v1747, %v1748
    %v1750 = vrot.slane %v1749, 1
    %v1751 = vadd.f32 %v1749, %v1750
    %v1752 = vsel %vm46, %v1656, 0.0
    %v1753 = vrot.slane %v1752, 4
    %v1754 = vadd.f32 %v1752, %v1753
    %v1755 = vrot.slane %v1754, 2
    %v1756 = vadd.f32 %v1754, %v1755
    %v1757 = vrot.slane %v1756, 1
    %v1758 = vadd.f32 %v1756, %v1757
    %v1759 = vsel %vm46, %v1658, 0.0
    %v1760 = vrot.slane %v1759, 4
    %v1761 = vadd.f32 %v1759, %v1760
    %v1762 = vrot.slane %v1761, 2
    %v1763 = vadd.f32 %v1761, %v1762
    %v1764 = vrot.slane %v1763, 1
    %v1765 = vadd.f32 %v1763, %v1764
    %v1766 = vsel %vm46, %v1660, 0.0
    %v1767 = vrot.slane %v1766, 4
    %v1768 = vadd.f32 %v1766, %v1767
    %v1769 = vrot.slane %v1768, 2
    %v1770 = vadd.f32 %v1768, %v1769
    %v1771 = vrot.slane %v1770, 1
    %v1772 = vadd.f32 %v1770, %v1771
    %v1773 = vrcp.pop %v1667
    %v1774 = vrcp.pop %v1674
    %v1775 = vrcp.pop %v1681
    %v1776 = vrcp.pop %v1688
    %v1777 = vrcp.pop %v1695
    %v1778 = vrcp.pop %v1702
    %v1779 = vrcp.pop %v1709
    %v1780 = vrcp.pop %v1716
    %v1781 = vrcp.pop %v1723
    %v1782 = vrcp.pop %v1730
    %v1783 = vrcp.pop %v1737
    %v1784 = vrcp.pop %v1744
    %v1785 = vrcp.pop %v1751
    %v1786 = vrcp.pop %v1758
    %v1787 = vrcp.pop %v1765
    %v1788 = vrcp.pop %v1772
    %v1789 = vmul.f32 %v1630, %v1773
    %v1790 = vmul.f32 %v1632, %v1774
    %v1791 = vmul.f32 %v1634, %v1775
    %v1792 = vmul.f32 %v1636, %v1776
    %v1793 = vmul.f32 %v1638, %v1777
    %v1794 = vmul.f32 %v1640, %v1778
    %v1795 = vmul.f32 %v1642, %v1779
    %v1796 = vmul.f32 %v1644, %v1780
    %v1797 = vmul.f32 %v1646, %v1781
    %v1798 = vmul.f32 %v1648, %v1782
    %v1799 = vmul.f32 %v1650, %v1783
    %v1800 = vmul.f32 %v1652, %v1784
    %v1801 = vmul.f32 %v1654, %v1785
    %v1802 = vmul.f32 %v1656, %v1786
    %v1803 = vmul.f32 %v1658, %v1787
    %v1804 = vmul.f32 %v1660, %v1788
    %1805 = vrot.lane.b32.xlu0 %v1081, 32
    %v1806 = vpop.permute.xlu0 %1805
    %1807 = vrot.lane.b32.xlu0 %v1084, 32
    %v1808 = vpop.permute.xlu0 %1807
    %v1811 = vmul.f32 %v1789, %v1806
    %v1812 = vmul.f32 %v1790, %v1806
    %v1813 = vmul.f32 %v1791, %v1806
    %v1814 = vmul.f32 %v1792, %v1806
    %v1815 = vmul.f32 %v1793, %v1806
    %v1816 = vmul.f32 %v1794, %v1806
    %v1817 = vmul.f32 %v1795, %v1806
    %v1818 = vmul.f32 %v1796, %v1806
    %v1819 = vmul.f32 %v1797, %v1808
    %v1820 = vmul.f32 %v1798, %v1808
    %v1821 = vmul.f32 %v1799, %v1808
    %v1822 = vmul.f32 %v1800, %v1808
    %v1823 = vmul.f32 %v1801, %v1808
    %v1824 = vmul.f32 %v1802, %v1808
    %v1825 = vmul.f32 %v1803, %v1808
    %v1826 = vmul.f32 %v1804, %v1808
    %v1827 = vsel %vm46, %v1811, 0.0
    %v1828 = vrot.slane %v1827, 4
    %v1829 = vadd.f32 %v1827, %v1828
    %v1830 = vrot.slane %v1829, 2
    %v1831 = vadd.f32 %v1829, %v1830
    %v1832 = vrot.slane %v1831, 1
    %v1833 = vadd.f32 %v1831, %v1832
    %v1834 = vsel %vm46, %v1812, 0.0
    %v1835 = vrot.slane %v1834, 4
    %v1836 = vadd.f32 %v1834, %v1835
    %v1837 = vrot.slane %v1836, 2
    %v1838 = vadd.f32 %v1836, %v1837
    %v1839 = vrot.slane %v1838, 1
    %v1840 = vadd.f32 %v1838, %v1839
    %v1841 = vsel %vm46, %v1813, 0.0
    %v1842 = vrot.slane %v1841, 4
    %v1843 = vadd.f32 %v1841, %v1842
    %v1844 = vrot.slane %v1843, 2
    %v1845 = vadd.f32 %v1843, %v1844
    %v1846 = vrot.slane %v1845, 1
    %v1847 = vadd.f32 %v1845, %v1846
    %v1848 = vsel %vm46, %v1814, 0.0
    %v1849 = vrot.slane %v1848, 4
    %v1850 = vadd.f32 %v1848, %v1849
    %v1851 = vrot.slane %v1850, 2
    %v1852 = vadd.f32 %v1850, %v1851
    %v1853 = vrot.slane %v1852, 1
    %v1854 = vadd.f32 %v1852, %v1853
    %v1855 = vsel %vm46, %v1815, 0.0
    %v1856 = vrot.slane %v1855, 4
    %v1857 = vadd.f32 %v1855, %v1856
    %v1858 = vrot.slane %v1857, 2
    %v1859 = vadd.f32 %v1857, %v1858
    %v1860 = vrot.slane %v1859, 1
    %v1861 = vadd.f32 %v1859, %v1860
    %v1862 = vsel %vm46, %v1816, 0.0
    %v1863 = vrot.slane %v1862, 4
    %v1864 = vadd.f32 %v1862, %v1863
    %v1865 = vrot.slane %v1864, 2
    %v1866 = vadd.f32 %v1864, %v1865
    %v1867 = vrot.slane %v1866, 1
    %v1868 = vadd.f32 %v1866, %v1867
    %v1869 = vsel %vm46, %v1817, 0.0
    %v1870 = vrot.slane %v1869, 4
    %v1871 = vadd.f32 %v1869, %v1870
    %v1872 = vrot.slane %v1871, 2
    %v1873 = vadd.f32 %v1871, %v1872
    %v1874 = vrot.slane %v1873, 1
    %v1875 = vadd.f32 %v1873, %v1874
    %v1876 = vsel %vm46, %v1818, 0.0
    %v1877 = vrot.slane %v1876, 4
    %v1878 = vadd.f32 %v1876, %v1877
    %v1879 = vrot.slane %v1878, 2
    %v1880 = vadd.f32 %v1878, %v1879
    %v1881 = vrot.slane %v1880, 1
    %v1882 = vadd.f32 %v1880, %v1881
    %v1883 = vsel %vm46, %v1819, 0.0
    %v1884 = vrot.slane %v1883, 4
    %v1885 = vadd.f32 %v1883, %v1884
    %v1886 = vrot.slane %v1885, 2
    %v1887 = vadd.f32 %v1885, %v1886
    %v1888 = vrot.slane %v1887, 1
    %v1889 = vadd.f32 %v1887, %v1888
    %v1890 = vsel %vm46, %v1820, 0.0
    %v1891 = vrot.slane %v1890, 4
    %v1892 = vadd.f32 %v1890, %v1891
    %v1893 = vrot.slane %v1892, 2
    %v1894 = vadd.f32 %v1892, %v1893
    %v1895 = vrot.slane %v1894, 1
    %v1896 = vadd.f32 %v1894, %v1895
    %v1897 = vsel %vm46, %v1821, 0.0
    %v1898 = vrot.slane %v1897, 4
    %v1899 = vadd.f32 %v1897, %v1898
    %v1900 = vrot.slane %v1899, 2
    %v1901 = vadd.f32 %v1899, %v1900
    %v1902 = vrot.slane %v1901, 1
    %v1903 = vadd.f32 %v1901, %v1902
    %v1904 = vsel %vm46, %v1822, 0.0
    %v1905 = vrot.slane %v1904, 4
    %v1906 = vadd.f32 %v1904, %v1905
    %v1907 = vrot.slane %v1906, 2
    %v1908 = vadd.f32 %v1906, %v1907
    %v1909 = vrot.slane %v1908, 1
    %v1910 = vadd.f32 %v1908, %v1909
    %v1911 = vsel %vm46, %v1823, 0.0
    %v1912 = vrot.slane %v1911, 4
    %v1913 = vadd.f32 %v1911, %v1912
    %v1914 = vrot.slane %v1913, 2
    %v1915 = vadd.f32 %v1913, %v1914
    %v1916 = vrot.slane %v1915, 1
    %v1917 = vadd.f32 %v1915, %v1916
    %v1918 = vsel %vm46, %v1824, 0.0
    %v1919 = vrot.slane %v1918, 4
    %v1920 = vadd.f32 %v1918, %v1919
    %v1921 = vrot.slane %v1920, 2
    %v1922 = vadd.f32 %v1920, %v1921
    %v1923 = vrot.slane %v1922, 1
    %v1924 = vadd.f32 %v1922, %v1923
    %v1925 = vsel %vm46, %v1825, 0.0
    %v1926 = vrot.slane %v1925, 4
    %v1927 = vadd.f32 %v1925, %v1926
    %v1928 = vrot.slane %v1927, 2
    %v1929 = vadd.f32 %v1927, %v1928
    %v1930 = vrot.slane %v1929, 1
    %v1931 = vadd.f32 %v1929, %v1930
    %v1932 = vsel %vm46, %v1826, 0.0
    %v1933 = vrot.slane %v1932, 4
    %v1934 = vadd.f32 %v1932, %v1933
    %v1935 = vrot.slane %v1934, 2
    %v1936 = vadd.f32 %v1934, %v1935
    %v1937 = vrot.slane %v1936, 1
    %v1938 = vadd.f32 %v1936, %v1937
    %v1939 = vmul.f32 %v1833, 0.125
    %v1940 = vmul.f32 %v1840, 0.125
    %v1941 = vmul.f32 %v1847, 0.125
    %v1942 = vmul.f32 %v1854, 0.125
    %v1943 = vmul.f32 %v1861, 0.125
    %v1944 = vmul.f32 %v1868, 0.125
    %v1945 = vmul.f32 %v1875, 0.125
    %v1946 = vmul.f32 %v1882, 0.125
    %v1947 = vmul.f32 %v1889, 0.125
    %v1948 = vmul.f32 %v1896, 0.125
    %v1949 = vmul.f32 %v1903, 0.125
    %v1950 = vmul.f32 %v1910, 0.125
    %v1951 = vmul.f32 %v1917, 0.125
    %v1952 = vmul.f32 %v1924, 0.125
    %v1953 = vmul.f32 %v1931, 0.125
    %v1954 = vmul.f32 %v1938, 0.125
    %v1971 = vsel %vm961, %v1940, %v1939
    %v1972 = vsel %vm963, %v1941, %v1971
    %v1973 = vsel %vm965, %v1942, %v1972
    %v1974 = vsel %vm967, %v1943, %v1973
    %v1975 = vsel %vm969, %v1944, %v1974
    %v1976 = vsel %vm971, %v1945, %v1975
    %v1977 = vsel %vm973, %v1946, %v1976
    %v1978 = vsel %vm961, %v1948, %v1947
    %v1979 = vsel %vm963, %v1949, %v1978
    %v1980 = vsel %vm965, %v1950, %v1979
    %v1981 = vsel %vm967, %v1951, %v1980
    %v1982 = vsel %vm969, %v1952, %v1981
    %v1983 = vsel %vm971, %v1953, %v1982
    %v1984 = vsel %vm973, %v1954, %v1983
    %1985 = vrot.lane.b32.xlu0 %v1977, 64
    %v1986 = vpop.permute.xlu0 %1985
    %1987 = vrot.lane.b32.xlu0 %v1984, 64
    %v1988 = vpop.permute.xlu0 %1987
    %v1991 = vadd.f32 %v1081, %v1986
    %v1992 = vadd.f32 %v1084, %v1988
    %1995 = vrot.lane.b32.xlu0 %v1991, 64
    %v1996 = vpop.permute.xlu0 %1995
    %1997 = vrot.lane.b32.xlu0 %v1992, 64
    %v1998 = vpop.permute.xlu0 %1997
    %v2001 = vsel %vm46, %v1996, 0.0
    %v2002 = vsel %vm46, %v1998, 0.0
    %v2003 = vadd.f32 %v2001, %v2002
    %2004 = vadd.xlane.f32.xlu0 %v2003
    %v2005 = vpop.xlane.xlu0 %2004
    %v2006 = vmul.f32 %v2005, 0.015625
    %v2007 = vsub.f32 %v1991, %v2006
    %v2008 = vsub.f32 %v1992, %v2006
    %v2009 = vmul.f32 %v2007, %v2007
    %v2010 = vmul.f32 %v2008, %v2008
    %2013 = vrot.lane.b32.xlu0 %v2009, 64
    %v2014 = vpop.permute.xlu0 %2013
    %2015 = vrot.lane.b32.xlu0 %v2010, 64
    %v2016 = vpop.permute.xlu0 %2015
    %v2019 = vsel %vm46, %v2014, 0.0
    %v2020 = vsel %vm46, %v2016, 0.0
    %v2021 = vadd.f32 %v2019, %v2020
    %2022 = vadd.xlane.f32.xlu0 %v2021
    %v2023 = vpop.xlane.xlu0 %2022
    %v2024 = vmul.f32 %v2023, 0.015625
    %v2025 = vadd.f32 %v2024, 1e-05
    %v2026 = vrsqrt.pop %v2025
    %v2027 = vmul.f32 %v2026, %v2025
    %v2028 = vmul.f32 %v2027, %v2026
    %v2029 = vmul.f32 0.5, %v2028
    %v2030 = vsub.f32 1.5, %v2029
    %v2031 = vmul.f32 %v2026, %v2030
    %vm2032 = vweird.f32 %v2025
    %vm2033 = vweird.f32 %v2026
    %vm2034 = vmor %vm2032, %vm2033
    %v2035 = vsel %vm2034, %v2026, %v2031
    %v2036 = vmul.f32 %v2007, %v2035
    %v2037 = vmul.f32 %v2008, %v2035
    %2040 = vrot.lane.b32.xlu0 %v2036, 64
    %v2041 = vpop.permute.xlu0 %2040
    %2042 = vrot.lane.b32.xlu0 %v2037, 64
    %v2043 = vpop.permute.xlu0 %2042
    %v2046 = vadd.f32 %v1045, %v2041
    %v2047 = vadd.f32 %v1046, %v2043
    %v2048 = vmax.f32 %v2046, 0.0
    %v2049 = vmax.f32 %v2047, 0.0
    %2050 = vst.msk [vmem:[#allocation2] sm:$0xff] %vm46, %v2048
    %2051 = vst.msk [vmem:[#allocation2 + $0x8] sm:$0xff] %vm46, %v2049
    %2052 = vst.msk [vmem:[%s5] sm:$0xff] %vm46, %v1533
    %2053 = vst.msk [vmem:[%s5 + $0x8] sm:$0xff] %vm46, %v1534
    %2054 = vst.msk [vmem:[%s5 + $0x10] sm:$0xff] %vm46, %v1535
    %2055 = vst.msk [vmem:[%s5 + $0x18] sm:$0xff] %vm46, %v1536
    %2056 = vst.msk [vmem:[%s5 + $0x20] sm:$0xff] %vm46, %v1537
    %2057 = vst.msk [vmem:[%s5 + $0x28] sm:$0xff] %vm46, %v1538
    %2058 = vst.msk [vmem:[%s5 + $0x30] sm:$0xff] %vm46, %v1539
    %2059 = vst.msk [vmem:[%s5 + $0x38] sm:$0xff] %vm46, %v1540
    %2060 = vst.msk [vmem:[%s5 + $0x40] sm:$0xff] %vm46, %v1541
    %2061 = vst.msk [vmem:[%s5 + $0x48] sm:$0xff] %vm46, %v1542
    %2062 = vst.msk [vmem:[%s5 + $0x50] sm:$0xff] %vm46, %v1543
    %2063 = vst.msk [vmem:[%s5 + $0x58] sm:$0xff] %vm46, %v1544
    %2064 = vst.msk [vmem:[%s5 + $0x60] sm:$0xff] %vm46, %v1545
    %2065 = vst.msk [vmem:[%s5 + $0x68] sm:$0xff] %vm46, %v1546
    %2066 = vst.msk [vmem:[%s5 + $0x70] sm:$0xff] %vm46, %v1547
    %2067 = vst.msk [vmem:[%s5 + $0x78] sm:$0xff] %vm46, %v1548
    // Predicated region
    $region18: #{_gnn_forward_impl.1} parent=1 // pred_check
      _
    $region19: #{_gnn_forward_impl.1} parent=1 // pred_check_branch
      %2069 = sbr.rel (0) target = $region21
    $region20: #{_gnn_forward_impl.1} parent=1 // pred_region
      %2071 = vsyncadd [#allocation3], 0
      %s2072 = sshll.u32 [#allocation2], 4
      %s2073 = int_to_ptr.vmem [resolvable:$true] %s2072
      %s2074 = sshll.u32 %s4, 4
      %s2075 = int_to_ptr.hbm [resolvable:$true] %s2074
      %2080 = dma.vmem_to_hbm [thread:$0]  %s2073, 256, %s2075, [#allocation3], 128, 128, 8
    $region21: #{_gnn_forward_impl.1} parent=1 // pred_fallthru
      _
    // Predicated region
    $region22: #{_gnn_forward_impl.1} parent=1 // pred_check
      _
    $region23: #{_gnn_forward_impl.1} parent=1 // pred_check_branch
      %2082 = sbr.rel (0) target = $region25
    $region24: #{_gnn_forward_impl.1} parent=1 // pred_region
      _
    $region25: #{_gnn_forward_impl.1} parent=1 // pred_fallthru
      _
    // Predicated region
    $region26: #{_gnn_forward_impl.1} parent=1 // pred_check
      _
    $region27: #{_gnn_forward_impl.1} parent=1 // pred_check_branch
      %2084 = sbr.rel (0) target = $region29
    $region28: #{_gnn_forward_impl.1} parent=1 // pred_region
      %2086 = dma.done [#allocation3], 256
    $region29: #{_gnn_forward_impl.1} parent=1 // pred_fallthru
      _
    // Predicated region
    $region30: #{_gnn_forward_impl.1} parent=1 // pred_check
      _
    $region31: #{_gnn_forward_impl.1} parent=1 // pred_check_branch
      %2088 = sbr.rel (0) target = $region33
    $region32: #{_gnn_forward_impl.1} parent=1 // pred_region
      _
    $region33: #{_gnn_forward_impl.1} parent=1 // pred_fallthru
      _
    %2089 = vsyncpa [#allocation3], 1

</llo_original>
